<compile_context>
chip_gen: v7x
topology: tpu7x:2x2x1
jax: 0.10.0
libtpu: 0.0.40
codegen_flags: <defaults>
</compile_context>

<pallas_src>
import functools

import jax
import jax.numpy as jnp
from jax.experimental import pallas as pl
from jax.experimental.pallas import tpu as pltpu


# ---------------------------------------------------------------------------
# Fused per-batch-block kernel.
# Row layout: stacked (image_in_block, spatial_row).  Lane layout: (w, channel).
# ---------------------------------------------------------------------------
def _fused_ae_kernel(x_ref, b1w_ref, b1b_ref, b2w_ref, b2b_ref,
                     m1_ref, t1b_ref, m2_ref, t2b_ref,
                     o_ref,
                     padx_ref, c1s_ref, padp1_ref, c2s_ref,
                     *, bb, H, W, Cin, F, C2):
    f32 = jnp.float32
    H2, W2 = H // 2, W // 2
    M, M2, M4 = bb * H, bb * (H // 2), bb * (H // 4)

    # ---------------- conv1: 3x3 same, Cin -> F, ReLU ---------------------------
    x = x_ref[...]                                              # (M, W*Cin)
    # zero only the two halo rows; interior is fully overwritten below
    padx_ref[0:1, :] = jnp.zeros((1, W * Cin), f32)
    padx_ref[M + 1:M + 2, :] = jnp.zeros((1, W * Cin), f32)
    padx_ref[1:M + 1, :] = x
    prev = padx_ref[0:M, :]                                     # row r-1 (zero above block)
    nxt = padx_ref[2:M + 2, :]                                  # row r+1 (zero below block)

    # per-image vertical masks (images are stacked along M)
    row1 = jax.lax.broadcasted_iota(jnp.int32, (M, W * F), 0) % H
    acc1 = jnp.dot(x, b1w_ref[1], preferred_element_type=f32)
    acc1 = acc1 + jnp.where(row1 != 0,
                            jnp.dot(prev, b1w_ref[0], preferred_element_type=f32), 0.0)
    acc1 = acc1 + jnp.where(row1 != H - 1,
                            jnp.dot(nxt, b1w_ref[2], preferred_element_type=f32), 0.0)
    c1 = jnp.maximum(acc1 + b1b_ref[...], 0.0)                  # (M, W*F)

    # ---------------- maxpool 2x2 #1 (exact f32, VPU) ---------------------------
    c1s_ref[...] = c1
    rp1 = jnp.maximum(c1s_ref[pl.ds(0, M2, stride=2), :],       # even rows
                      c1s_ref[pl.ds(1, M2, stride=2), :])       # odd rows
    # pairwise max along w (lane groups of F); valid data lives at even-w groups,
    # odd-w lanes become don't-care and are zero-weighted by conv2's band weights.
    p1 = jnp.maximum(rp1, jnp.roll(rp1, -F, axis=1))            # (M2, W*F)

    # ---------------- conv2: 3x3 same, F -> C2, ReLU ----------------------------
    padp1_ref[0:1, :] = jnp.zeros((1, W * F), f32)
    padp1_ref[M2 + 1:M2 + 2, :] = jnp.zeros((1, W * F), f32)
    padp1_ref[1:M2 + 1, :] = p1
    prev2 = padp1_ref[0:M2, :]
    nxt2 = padp1_ref[2:M2 + 2, :]

    row2 = jax.lax.broadcasted_iota(jnp.int32, (M2, W2 * C2), 0) % H2
    acc2 = jnp.dot(p1, b2w_ref[1], preferred_element_type=f32)
    acc2 = acc2 + jnp.where(row2 != 0,
                            jnp.dot(prev2, b2w_ref[0], preferred_element_type=f32), 0.0)
    acc2 = acc2 + jnp.where(row2 != H2 - 1,
                            jnp.dot(nxt2, b2w_ref[2], preferred_element_type=f32), 0.0)
    c2 = jnp.maximum(acc2 + b2b_ref[...], 0.0)                  # (M2, W2*C2)

    # ---------------- maxpool 2x2 #2 (exact f32, VPU) ---------------------------
    c2s_ref[...] = c2
    rp2 = jnp.maximum(c2s_ref[pl.ds(0, M4, stride=2), :],
                      c2s_ref[pl.ds(1, M4, stride=2), :])       # (M4, W2*C2)
    p2 = jnp.maximum(rp2, jnp.roll(rp2, -C2, axis=1))           # valid at even-w2 groups

    # ---------------- t_conv1 (2x2, stride 2) + ReLU: one per-pixel matmul ------
    # m1 absorbs pool2's even-lane selection; output lanes = (dh1, w4, dw1, f).
    u1 = jnp.maximum(jnp.dot(p2, m1_ref[...], preferred_element_type=f32)
                     + t1b_ref[...], 0.0)                       # (M4, 2*W4*2*F)

    # ---------------- t_conv2 (2x2, stride 2) + sigmoid -------------------------
    # output lanes = (dh1, dh2, w4, dw1, dw2, ci), lane-padded to a 128 multiple;
    # host unfolds with a free reshape.
    y = jnp.dot(u1, m2_ref[...], preferred_element_type=f32) + t2b_ref[...]
    o_ref[...] = jax.nn.sigmoid(y).astype(o_ref.dtype)          # (M4, OUT_L)


# ---------------------------------------------------------------------------
# Host-side constant packing (a few kron/eye ops on <0.5 MB of weights).
# ---------------------------------------------------------------------------
def _prepare_constants(params, H, W, Cin, F, C2, out_l):
    f32 = jnp.float32
    W2, W4 = W // 2, W // 4

    w1 = params["w1"].astype(f32)     # (F,  Cin, 3, 3)
    w2 = params["w2"].astype(f32)     # (C2, F,   3, 3)
    tw1 = params["tw1"].astype(f32)   # (C2, F,   2, 2)
    tw2 = params["tw2"].astype(f32)   # (F,  Cin, 2, 2)

    def band3x3(w_oihw, wc, dilated_input):
        # Per-kh band weight; horizontal halo folded in (out-of-range taps vanish).
        # Rows: input lanes (w_in, cin)  (2x dilated if `dilated_input`: data at even w_in).
        # Cols: output lanes (w_out, cout), w_out compacted.
        cout, cin = w_oihw.shape[0], w_oihw.shape[1]
        win = 2 * wc if dilated_input else wc
        expand = (jnp.eye(win, dtype=f32)[:, 0::2] if dilated_input
                  else jnp.eye(wc, dtype=f32))
        slabs = []
        for kh in range(3):
            acc = jnp.zeros((win * cin, wc * cout), f32)
            for kw in range(3):
                sel = expand @ jnp.eye(wc, wc, k=1 - kw, dtype=f32)
                acc = acc + jnp.kron(sel, w_oihw[:, :, kh, kw].T)
            slabs.append(acc)
        return jnp.stack(slabs)

    b1w = band3x3(w1, W, dilated_input=False)                  # (3, W*Cin, W*F)
    b1b = jnp.tile(params["b1"].astype(f32), W).reshape(1, W * F)
    b2w = band3x3(w2, W2, dilated_input=True)                  # (3, W*F, W2*C2)
    b2b = jnp.tile(params["b2"].astype(f32), W2).reshape(1, W2 * C2)

    # t_conv1: per-pixel map absorbing pool2's even-lane selection.
    # rows: (w2', c2) uncompacted (only even w2' used); cols: (dh1, w4, dw1, f)
    expand2 = jnp.eye(W2, dtype=f32)[:, 0::2]                  # (W2, W4)
    m1_halves = []
    for dh1 in range(2):
        t = jnp.transpose(tw1[:, :, dh1, :], (0, 2, 1)).reshape(C2, 2 * F)  # (c2,(dw1,f))
        m1_halves.append(jnp.kron(expand2, t))                 # (W2*C2, W4*2*F)
    m1 = jnp.concatenate(m1_halves, axis=1)                    # (W2*C2, 2*W4*2*F)
    t1b = jnp.tile(params["tb1"].astype(f32), 2 * W4 * 2).reshape(1, 2 * W4 * 2 * F)

    # t_conv2: per-pixel map; cols = final folded lanes (dh1, dh2, w4, dw1, dw2, ci).
    eye_wd = jnp.eye(2 * W4, dtype=f32)                        # over (w4, dw1)
    g = [jnp.transpose(tw2[:, :, dh2, :], (0, 2, 1)).reshape(F, 2 * Cin)
         for dh2 in range(2)]                                  # (f, (dw2, ci))
    inner = jnp.concatenate([jnp.kron(eye_wd, g[0]), jnp.kron(eye_wd, g[1])], axis=1)
    m2 = jnp.kron(jnp.eye(2, dtype=f32), inner)                # (2*W4*2*F, 16*W4*Cin)
    t2b = jnp.tile(params["tb2"].astype(f32), 16 * W4).reshape(1, 16 * W4 * Cin)

    out_l_raw = 16 * W4 * Cin
    if out_l > out_l_raw:                                      # keep output lane-dense
        m2 = jnp.pad(m2, ((0, 0), (0, out_l - out_l_raw)))
        t2b = jnp.pad(t2b, ((0, 0), (0, out_l - out_l_raw)))

    return (b1w, b1b, b2w, b2b, m1, t1b, m2, t2b)


# ---------------------------------------------------------------------------
# Forward wrapper
# ---------------------------------------------------------------------------
def convolutional_ae_forward(x_nchw, params):
    N, Cin, H, W = x_nchw.shape
    F = params["w1"].shape[0]
    C2 = params["w2"].shape[0]
    assert H % 4 == 0 and W % 4 == 0, "spatial dims must be divisible by 4"
    H4, W4 = H // 4, W // 4

    # Batch-block size: fold bb images into the matmul M dimension (~128 rows).
    # For large N this also yields many parallel grid steps (>=2 per v7x core).
    bb = max(1, min(N, 128 // H)) if H <= 128 else 1
    NB = pl.cdiv(N, bb)
    N_pad = NB * bb

    out_l_raw = 16 * W4 * Cin                      # = 4*W*Cin folded output lanes
    out_l = ((out_l_raw + 127) // 128) * 128       # lane-dense for any shape

    consts = _prepare_constants(params, H, W, Cin, F, C2, out_l)

    # NCHW -> NHWC (a real, tiny XLA transpose) -> stacked batch blocks.
    x2d = jnp.transpose(x_nchw, (0, 2, 3, 1)).astype(jnp.float32).reshape(N, H, W * Cin)
    if N_pad != N:
        x2d = jnp.pad(x2d, ((0, N_pad - N), (0, 0), (0, 0)))
    x2d = x2d.reshape(NB, bb * H, W * Cin)

    kernel = functools.partial(_fused_ae_kernel, bb=bb, H=H, W=W, Cin=Cin, F=F, C2=C2)

    def _const_spec(c):
        nd = c.ndim
        return pl.BlockSpec(c.shape, lambda b, _nd=nd: (0,) * _nd)

    in_specs = ([pl.BlockSpec((None, bb * H, W * Cin), lambda b: (b, 0, 0))] +
                [_const_spec(c) for c in consts])
    out_specs = pl.BlockSpec((None, bb * H4, out_l), lambda b: (b, 0, 0))

    folded = pl.pallas_call(
        kernel,
        out_shape=jax.ShapeDtypeStruct((NB, bb * H4, out_l), jnp.float32),
        grid=(NB,),
        in_specs=in_specs,
        out_specs=out_specs,
        scratch_shapes=[
            pltpu.VMEM((bb * H + 2, W * Cin), jnp.float32),        # conv1 input + row halo
            pltpu.VMEM((bb * H, W * F), jnp.float32),              # c1 (row-pool strided loads)
            pltpu.VMEM((bb * (H // 2) + 2, W * F), jnp.float32),   # pool1 + row halo
            pltpu.VMEM((bb * (H // 2), (W // 2) * C2), jnp.float32),  # c2 (row-pool)
        ],
        compiler_params=pltpu.CompilerParams(
            dimension_semantics=("parallel",),
            vmem_limit_bytes=32 * 1024 * 1024,
        ),
    )(x2d, *consts)

    # Unfold: lanes (dh1, dh2, w4, dw1, dw2, ci) and rows (h4) -> NHWC, all free reshapes.
    y = folded[..., :out_l_raw].reshape(N_pad, H4, 2, 2, W4, 2, 2, Cin)
    y = y.reshape(N_pad, H, W, Cin)[:N]
    return jnp.transpose(y, (0, 3, 1, 2))          # NHWC -> NCHW (real, tiny transpose)


# ---------------------------------------------------------------------------
# Pure-JAX reference (for in-script correctness check)
# ---------------------------------------------------------------------------
def _reference_forward(x_nchw, params):
    hp = jax.lax.Precision.HIGHEST
    x = jnp.transpose(x_nchw, (0, 2, 3, 1))

    def conv3(x, w, b):
        N, H, W, _ = x.shape
        xp = jnp.pad(x, ((0, 0), (1, 1), (1, 1), (0, 0)))
        out = jnp.zeros((N, H, W, w.shape[0]), jnp.float32)
        for kh in range(3):
            for kw in range(3):
                out = out + jnp.einsum("nhwc,oc->nhwo",
                                       xp[:, kh:kh + H, kw:kw + W, :],
                                       w[:, :, kh, kw], precision=hp)
        return jax.nn.relu(out + b)

    def pool(x):
        N, H, W, C = x.shape
        return x.reshape(N, H // 2, 2, W // 2, 2, C).max(axis=(2, 4))

    def tconv(x, w, b):
        N, H, W, _ = x.shape
        co = w.shape[1]
        y = jnp.einsum("nhwc,cokl->nhkwlo", x, w, precision=hp)
        return y.reshape(N, 2 * H, 2 * W, co) + b

    x = pool(conv3(x, params["w1"], params["b1"]))
    x = pool(conv3(x, params["w2"], params["b2"]))
    x = jax.nn.relu(tconv(x, params["tw1"], params["tb1"]))
    x = jax.nn.sigmoid(tconv(x, params["tw2"], params["tb2"]))
    return jnp.transpose(x, (0, 3, 1, 2))


# ---------------------------------------------------------------------------
# Parameter init matching torch defaults (kaiming_uniform(a=sqrt(5)) == U(+-1/sqrt(fan_in)))
# ---------------------------------------------------------------------------
def init_params(num_channels, num_filters, key):
    def u(k, shape, fan_in):
        bound = float(fan_in) ** -0.5
        return jax.random.uniform(k, shape, jnp.float32, -bound, bound)

    ks = jax.random.split(key, 8)
    p = {}
    p["w1"] = u(ks[0], (num_filters, num_channels, 3, 3), num_channels * 9)
    p["b1"] = u(ks[1], (num_filters,), num_channels * 9)
    p["w2"] = u(ks[2], (4, num_filters, 3, 3), num_filters * 9)
    p["b2"] = u(ks[3], (4,), num_filters * 9)
    # ConvTranspose2d(4, F, 2, 2): weight (4, F, 2, 2); torch fan_in = F * 2 * 2
    p["tw1"] = u(ks[4], (4, num_filters, 2, 2), num_filters * 4)
    p["tb1"] = u(ks[5], (num_filters,), num_filters * 4)
    # ConvTranspose2d(F, C, 2, 2): weight (F, C, 2, 2); torch fan_in = C * 2 * 2
    p["tw2"] = u(ks[6], (num_filters, num_channels, 2, 2), num_channels * 4)
    p["tb2"] = u(ks[7], (num_channels,), num_channels * 4)
    return p


if __name__ == "__main__":
    num_channels, num_filters = 4, 8
    root = jax.random.PRNGKey(0)
    pkey, xkey = jax.random.split(root)
    params = init_params(num_channels, num_filters, pkey)
    x = jax.random.uniform(xkey, (2, num_channels, 16, 16), jnp.float32)

    fwd = jax.jit(convolutional_ae_forward)
    out = fwd(x, params)
    jax.block_until_ready(out)

    assert out.shape == (2, num_channels, 16, 16)
    assert bool(jnp.all((out >= 0.0) & (out <= 1.0)))  # sigmoid output range

    ref = jax.jit(_reference_forward)(x, params)
    max_err = float(jnp.max(jnp.abs(out - ref)))
    assert max_err < 2e-2, f"mismatch vs reference: {max_err}"

    print("KERNEL_OK")
</pallas_src>

<mosaic_0001>
module attributes {stable_mosaic.version = 11 : i64} {
  func.func @_fused_ae_kernel(%arg0: i32, %arg1: memref<1x32x64xf32, #tpu.memory_space<vmem>>, %arg2: memref<3x64x128xf32, #tpu.memory_space<vmem>>, %arg3: memref<1x128xf32, #tpu.memory_space<vmem>>, %arg4: memref<3x128x32xf32, #tpu.memory_space<vmem>>, %arg5: memref<1x32xf32, #tpu.memory_space<vmem>>, %arg6: memref<32x128xf32, #tpu.memory_space<vmem>>, %arg7: memref<1x128xf32, #tpu.memory_space<vmem>>, %arg8: memref<128x256xf32, #tpu.memory_space<vmem>>, %arg9: memref<1x256xf32, #tpu.memory_space<vmem>>, %arg10: memref<1x8x256xf32, #tpu.memory_space<vmem>>, %arg11: memref<34x64xf32, #tpu.memory_space<vmem>>, %arg12: memref<32x128xf32, #tpu.memory_space<vmem>>, %arg13: memref<18x128xf32, #tpu.memory_space<vmem>>, %arg14: memref<16x32xf32, #tpu.memory_space<vmem>>) attributes {dimension_semantics = [#tpu.dimension_semantics<parallel>], iteration_bounds = array<i64: 1>, scalar_prefetch = 0 : i64, scratch_operands = 4 : i64, tpu.core_type = #tpu.core_type<tc>, window_params = [{transform_indices = @transform_0, window_bounds = array<i64: 1, 32, 64>}, {pipeline_mode = #tpu.pipeline_mode<synchronous>, transform_indices = @transform_1, window_bounds = array<i64: 3, 64, 128>}, {pipeline_mode = #tpu.pipeline_mode<synchronous>, transform_indices = @transform_2, window_bounds = array<i64: 1, 128>}, {pipeline_mode = #tpu.pipeline_mode<synchronous>, transform_indices = @transform_3, window_bounds = array<i64: 3, 128, 32>}, {pipeline_mode = #tpu.pipeline_mode<synchronous>, transform_indices = @transform_4, window_bounds = array<i64: 1, 32>}, {pipeline_mode = #tpu.pipeline_mode<synchronous>, transform_indices = @transform_5, window_bounds = array<i64: 32, 128>}, {pipeline_mode = #tpu.pipeline_mode<synchronous>, transform_indices = @transform_6, window_bounds = array<i64: 1, 128>}, {pipeline_mode = #tpu.pipeline_mode<synchronous>, transform_indices = @transform_7, window_bounds = array<i64: 128, 256>}, {pipeline_mode = #tpu.pipeline_mode<synchronous>, transform_indices = @transform_8, window_bounds = array<i64: 1, 256>}, {transform_indices = @transform_9, window_bounds = array<i64: 1, 8, 256>}]} {
    %c0 = arith.constant 0 : index
    %c0_0 = arith.constant 0 : index
    %c0_1 = arith.constant 0 : index
    %0 = vector.load %arg1[%c0, %c0_0, %c0_1] : memref<1x32x64xf32, #tpu.memory_space<vmem>>, vector<1x32x64xf32>
    %1 = vector.shape_cast %0 : vector<1x32x64xf32> to vector<32x64xf32>
    %cst = arith.constant 0.000000e+00 : f32
    %2 = vector.broadcast %cst : f32 to vector<1x64xf32>
    %c0_2 = arith.constant 0 : index
    %c0_3 = arith.constant 0 : index
    %3 = vector.load %arg11[%c0_2, %c0_3] : memref<34x64xf32, #tpu.memory_space<vmem>>, vector<1x64xf32>
    tpu.vector_store %arg11[%c0_2, %c0_3], %2 {strides = array<i32>} : memref<34x64xf32, #tpu.memory_space<vmem>>, vector<1x64xf32>,
    %cst_4 = arith.constant 0.000000e+00 : f32
    %4 = vector.broadcast %cst_4 : f32 to vector<1x64xf32>
    %c33 = arith.constant 33 : index
    %c0_5 = arith.constant 0 : index
    %5 = vector.load %arg11[%c33, %c0_5] : memref<34x64xf32, #tpu.memory_space<vmem>>, vector<1x64xf32>
    tpu.vector_store %arg11[%c33, %c0_5], %4 {strides = array<i32>} : memref<34x64xf32, #tpu.memory_space<vmem>>, vector<1x64xf32>,
    %c1 = arith.constant 1 : index
    %c0_6 = arith.constant 0 : index
    %6 = vector.load %arg11[%c1, %c0_6] : memref<34x64xf32, #tpu.memory_space<vmem>>, vector<32x64xf32>
    tpu.vector_store %arg11[%c1, %c0_6], %1 {strides = array<i32>} : memref<34x64xf32, #tpu.memory_space<vmem>>, vector<32x64xf32>,
    %c0_7 = arith.constant 0 : index
    %c0_8 = arith.constant 0 : index
    %7 = vector.load %arg11[%c0_7, %c0_8] : memref<34x64xf32, #tpu.memory_space<vmem>>, vector<32x64xf32>
    %c2 = arith.constant 2 : index
    %c0_9 = arith.constant 0 : index
    %8 = vector.load %arg11[%c2, %c0_9] : memref<34x64xf32, #tpu.memory_space<vmem>>, vector<32x64xf32>
    %9 = tpu.iota {dimensions = array<i32: 0>} : vector<32x128xi32>
    %c16_i32 = arith.constant 16 : i32
    %c0_i32 = arith.constant 0 : i32
    %10 = arith.cmpi eq, %c16_i32, %c0_i32 : i32
    %c1_i32 = arith.constant 1 : i32
    %11 = arith.select %10, %c1_i32, %c16_i32 : i32
    %12 = vector.broadcast %11 : i32 to vector<32x128xi32>
    %13 = arith.remsi %9, %12 : vector<32x128xi32>
    %c0_i32_10 = arith.constant 0 : i32
    %14 = vector.broadcast %c0_i32_10 : i32 to vector<32x128xi32>
    %15 = arith.cmpi ne, %13, %14 : vector<32x128xi32>
    %c0_i32_11 = arith.constant 0 : i32
    %16 = vector.broadcast %c0_i32_11 : i32 to vector<32x128xi32>
    %17 = arith.cmpi slt, %13, %16 : vector<32x128xi32>
    %c0_i32_12 = arith.constant 0 : i32
    %18 = arith.cmpi slt, %11, %c0_i32_12 : i32
    %19 = vector.broadcast %18 : i1 to vector<32x128xi1>
    %20 = vector.broadcast %19 : vector<32x128xi1> to vector<32x128xi1>
    %21 = arith.xori %17, %20 : vector<32x128xi1>
    %22 = arith.andi %21, %15 : vector<32x128xi1>
    %23 = vector.broadcast %11 : i32 to vector<32x128xi32>
    %24 = arith.addi %13, %23 : vector<32x128xi32>
    %25 = arith.select %22, %24, %13 : vector<32x128xi1>, vector<32x128xi32>
    %c1_13 = arith.constant 1 : index
    %c0_14 = arith.constant 0 : index
    %c0_15 = arith.constant 0 : index
    %26 = vector.load %arg2[%c1_13, %c0_14, %c0_15] : memref<3x64x128xf32, #tpu.memory_space<vmem>>, vector<1x64x128xf32>
    %27 = vector.shape_cast %26 : vector<1x64x128xf32> to vector<64x128xf32>
    %cst_16 = arith.constant dense<0.000000e+00> : vector<32x128xf32>
    %28 = tpu.matmul %1, %27, %cst_16 {dimension_numbers = #tpu.dot_dimension_numbers<[1], [0], [0], [1], [0, 0, 1, 1], [], []>} : vector<32x64xf32>, vector<64x128xf32>, vector<32x128xf32> -> vector<32x128xf32>
    %c0_i32_17 = arith.constant 0 : i32
    %29 = vector.broadcast %c0_i32_17 : i32 to vector<32x128xi32>
    %30 = arith.cmpi ne, %25, %29 : vector<32x128xi32>
    %c0_18 = arith.constant 0 : index
    %c0_19 = arith.constant 0 : index
    %c0_20 = arith.constant 0 : index
    %31 = vector.load %arg2[%c0_18, %c0_19, %c0_20] : memref<3x64x128xf32, #tpu.memory_space<vmem>>, vector<1x64x128xf32>
    %32 = vector.shape_cast %31 : vector<1x64x128xf32> to vector<64x128xf32>
    %cst_21 = arith.constant dense<0.000000e+00> : vector<32x128xf32>
    %33 = tpu.matmul %7, %32, %cst_21 {dimension_numbers = #tpu.dot_dimension_numbers<[1], [0], [0], [1], [0, 0, 1, 1], [], []>} : vector<32x64xf32>, vector<64x128xf32>, vector<32x128xf32> -> vector<32x128xf32>
    %cst_22 = arith.constant 0.000000e+00 : f32
    %34 = vector.broadcast %cst_22 : f32 to vector<32x128xf32>
    %35 = arith.select %30, %33, %34 : vector<32x128xi1>, vector<32x128xf32>
    %36 = arith.addf %28, %35 : vector<32x128xf32>
    %c15_i32 = arith.constant 15 : i32
    %37 = vector.broadcast %c15_i32 : i32 to vector<32x128xi32>
    %38 = arith.cmpi ne, %25, %37 : vector<32x128xi32>
    %c2_23 = arith.constant 2 : index
    %c0_24 = arith.constant 0 : index
    %c0_25 = arith.constant 0 : index
    %39 = vector.load %arg2[%c2_23, %c0_24, %c0_25] : memref<3x64x128xf32, #tpu.memory_space<vmem>>, vector<1x64x128xf32>
    %40 = vector.shape_cast %39 : vector<1x64x128xf32> to vector<64x128xf32>
    %cst_26 = arith.constant dense<0.000000e+00> : vector<32x128xf32>
    %41 = tpu.matmul %8, %40, %cst_26 {dimension_numbers = #tpu.dot_dimension_numbers<[1], [0], [0], [1], [0, 0, 1, 1], [], []>} : vector<32x64xf32>, vector<64x128xf32>, vector<32x128xf32> -> vector<32x128xf32>
    %cst_27 = arith.constant 0.000000e+00 : f32
    %42 = vector.broadcast %cst_27 : f32 to vector<32x128xf32>
    %43 = arith.select %38, %41, %42 : vector<32x128xi1>, vector<32x128xf32>
    %44 = arith.addf %36, %43 : vector<32x128xf32>
    %c0_28 = arith.constant 0 : index
    %c0_29 = arith.constant 0 : index
    %45 = vector.load %arg3[%c0_28, %c0_29] : memref<1x128xf32, #tpu.memory_space<vmem>>, vector<1x128xf32>
    %46 = vector.broadcast %45 : vector<1x128xf32> to vector<32x128xf32>
    %47 = arith.addf %44, %46 : vector<32x128xf32>
    %cst_30 = arith.constant 0.000000e+00 : f32
    %48 = vector.broadcast %cst_30 : f32 to vector<32x128xf32>
    %49 = arith.maximumf %47, %48 : vector<32x128xf32>
    %c0_31 = arith.constant 0 : index
    %c0_32 = arith.constant 0 : index
    %50 = vector.load %arg12[%c0_31, %c0_32] : memref<32x128xf32, #tpu.memory_space<vmem>>, vector<32x128xf32>
    tpu.vector_store %arg12[%c0_31, %c0_32], %49 {strides = array<i32>} : memref<32x128xf32, #tpu.memory_space<vmem>>, vector<32x128xf32>,
    %c0_33 = arith.constant 0 : index
    %c0_34 = arith.constant 0 : index
    %51 = tpu.strided_load %arg12[%c0_33, %c0_34] {strides = array<i32: 2, 1>} : memref<32x128xf32, #tpu.memory_space<vmem>>, vector<16x128xf32>
    %c1_35 = arith.constant 1 : index
    %c0_36 = arith.constant 0 : index
    %52 = tpu.strided_load %arg12[%c1_35, %c0_36] {strides = array<i32: 2, 1>} : memref<32x128xf32, #tpu.memory_space<vmem>>, vector<16x128xf32>
    %53 = arith.maximumf %51, %52 : vector<16x128xf32>
    %54 = vector.extract_strided_slice %53 {offsets = [0, 8], sizes = [16, 120], strides = [1, 1]} : vector<16x128xf32> to vector<16x120xf32>
    %55 = vector.extract_strided_slice %53 {offsets = [0, 0], sizes = [16, 8], strides = [1, 1]} : vector<16x128xf32> to vector<16x8xf32>
    %56 = tpu.concatenate %54, %55 in 1 : vector<16x120xf32>, vector<16x8xf32> -> vector<16x128xf32>
    %57 = arith.maximumf %53, %56 : vector<16x128xf32>
    %cst_37 = arith.constant 0.000000e+00 : f32
    %58 = vector.broadcast %cst_37 : f32 to vector<1x128xf32>
    %c0_38 = arith.constant 0 : index
    %c0_39 = arith.constant 0 : index
    %59 = vector.load %arg13[%c0_38, %c0_39] : memref<18x128xf32, #tpu.memory_space<vmem>>, vector<1x128xf32>
    tpu.vector_store %arg13[%c0_38, %c0_39], %58 {strides = array<i32>} : memref<18x128xf32, #tpu.memory_space<vmem>>, vector<1x128xf32>,
    %cst_40 = arith.constant 0.000000e+00 : f32
    %60 = vector.broadcast %cst_40 : f32 to vector<1x128xf32>
    %c17 = arith.constant 17 : index
    %c0_41 = arith.constant 0 : index
    %61 = vector.load %arg13[%c17, %c0_41] : memref<18x128xf32, #tpu.memory_space<vmem>>, vector<1x128xf32>
    tpu.vector_store %arg13[%c17, %c0_41], %60 {strides = array<i32>} : memref<18x128xf32, #tpu.memory_space<vmem>>, vector<1x128xf32>,
    %c1_42 = arith.constant 1 : index
    %c0_43 = arith.constant 0 : index
    %62 = vector.load %arg13[%c1_42, %c0_43] : memref<18x128xf32, #tpu.memory_space<vmem>>, vector<16x128xf32>
    tpu.vector_store %arg13[%c1_42, %c0_43], %57 {strides = array<i32>} : memref<18x128xf32, #tpu.memory_space<vmem>>, vector<16x128xf32>,
    %c0_44 = arith.constant 0 : index
    %c0_45 = arith.constant 0 : index
    %63 = vector.load %arg13[%c0_44, %c0_45] : memref<18x128xf32, #tpu.memory_space<vmem>>, vector<16x128xf32>
    %c2_46 = arith.constant 2 : index
    %c0_47 = arith.constant 0 : index
    %64 = vector.load %arg13[%c2_46, %c0_47] : memref<18x128xf32, #tpu.memory_space<vmem>>, vector<16x128xf32>
    %65 = tpu.iota {dimensions = array<i32: 0>} : vector<16x32xi32>
    %c8_i32 = arith.constant 8 : i32
    %c0_i32_48 = arith.constant 0 : i32
    %66 = arith.cmpi eq, %c8_i32, %c0_i32_48 : i32
    %c1_i32_49 = arith.constant 1 : i32
    %67 = arith.select %66, %c1_i32_49, %c8_i32 : i32
    %68 = vector.broadcast %67 : i32 to vector<16x32xi32>
    %69 = arith.remsi %65, %68 : vector<16x32xi32>
    %c0_i32_50 = arith.constant 0 : i32
    %70 = vector.broadcast %c0_i32_50 : i32 to vector<16x32xi32>
    %71 = arith.cmpi ne, %69, %70 : vector<16x32xi32>
    %c0_i32_51 = arith.constant 0 : i32
    %72 = vector.broadcast %c0_i32_51 : i32 to vector<16x32xi32>
    %73 = arith.cmpi slt, %69, %72 : vector<16x32xi32>
    %c0_i32_52 = arith.constant 0 : i32
    %74 = arith.cmpi slt, %67, %c0_i32_52 : i32
    %75 = vector.broadcast %74 : i1 to vector<16x32xi1>
    %76 = vector.broadcast %75 : vector<16x32xi1> to vector<16x32xi1>
    %77 = arith.xori %73, %76 : vector<16x32xi1>
    %78 = arith.andi %77, %71 : vector<16x32xi1>
    %79 = vector.broadcast %67 : i32 to vector<16x32xi32>
    %80 = arith.addi %69, %79 : vector<16x32xi32>
    %81 = arith.select %78, %80, %69 : vector<16x32xi1>, vector<16x32xi32>
    %c1_53 = arith.constant 1 : index
    %c0_54 = arith.constant 0 : index
    %c0_55 = arith.constant 0 : index
    %82 = vector.load %arg4[%c1_53, %c0_54, %c0_55] : memref<3x128x32xf32, #tpu.memory_space<vmem>>, vector<1x128x32xf32>
    %83 = vector.shape_cast %82 : vector<1x128x32xf32> to vector<128x32xf32>
    %cst_56 = arith.constant dense<0.000000e+00> : vector<16x32xf32>
    %84 = tpu.matmul %57, %83, %cst_56 {dimension_numbers = #tpu.dot_dimension_numbers<[1], [0], [0], [1], [0, 0, 1, 1], [], []>} : vector<16x128xf32>, vector<128x32xf32>, vector<16x32xf32> -> vector<16x32xf32>
    %c0_i32_57 = arith.constant 0 : i32
    %85 = vector.broadcast %c0_i32_57 : i32 to vector<16x32xi32>
    %86 = arith.cmpi ne, %81, %85 : vector<16x32xi32>
    %c0_58 = arith.constant 0 : index
    %c0_59 = arith.constant 0 : index
    %c0_60 = arith.constant 0 : index
    %87 = vector.load %arg4[%c0_58, %c0_59, %c0_60] : memref<3x128x32xf32, #tpu.memory_space<vmem>>, vector<1x128x32xf32>
    %88 = vector.shape_cast %87 : vector<1x128x32xf32> to vector<128x32xf32>
    %cst_61 = arith.constant dense<0.000000e+00> : vector<16x32xf32>
    %89 = tpu.matmul %63, %88, %cst_61 {dimension_numbers = #tpu.dot_dimension_numbers<[1], [0], [0], [1], [0, 0, 1, 1], [], []>} : vector<16x128xf32>, vector<128x32xf32>, vector<16x32xf32> -> vector<16x32xf32>
    %cst_62 = arith.constant 0.000000e+00 : f32
    %90 = vector.broadcast %cst_62 : f32 to vector<16x32xf32>
    %91 = arith.select %86, %89, %90 : vector<16x32xi1>, vector<16x32xf32>
    %92 = arith.addf %84, %91 : vector<16x32xf32>
    %c7_i32 = arith.constant 7 : i32
    %93 = vector.broadcast %c7_i32 : i32 to vector<16x32xi32>
    %94 = arith.cmpi ne, %81, %93 : vector<16x32xi32>
    %c2_63 = arith.constant 2 : index
    %c0_64 = arith.constant 0 : index
    %c0_65 = arith.constant 0 : index
    %95 = vector.load %arg4[%c2_63, %c0_64, %c0_65] : memref<3x128x32xf32, #tpu.memory_space<vmem>>, vector<1x128x32xf32>
    %96 = vector.shape_cast %95 : vector<1x128x32xf32> to vector<128x32xf32>
    %cst_66 = arith.constant dense<0.000000e+00> : vector<16x32xf32>
    %97 = tpu.matmul %64, %96, %cst_66 {dimension_numbers = #tpu.dot_dimension_numbers<[1], [0], [0], [1], [0, 0, 1, 1], [], []>} : vector<16x128xf32>, vector<128x32xf32>, vector<16x32xf32> -> vector<16x32xf32>
    %cst_67 = arith.constant 0.000000e+00 : f32
    %98 = vector.broadcast %cst_67 : f32 to vector<16x32xf32>
    %99 = arith.select %94, %97, %98 : vector<16x32xi1>, vector<16x32xf32>
    %100 = arith.addf %92, %99 : vector<16x32xf32>
    %c0_68 = arith.constant 0 : index
    %c0_69 = arith.constant 0 : index
    %101 = vector.load %arg5[%c0_68, %c0_69] : memref<1x32xf32, #tpu.memory_space<vmem>>, vector<1x32xf32>
    %102 = vector.broadcast %101 : vector<1x32xf32> to vector<16x32xf32>
    %103 = arith.addf %100, %102 : vector<16x32xf32>
    %cst_70 = arith.constant 0.000000e+00 : f32
    %104 = vector.broadcast %cst_70 : f32 to vector<16x32xf32>
    %105 = arith.maximumf %103, %104 : vector<16x32xf32>
    %c0_71 = arith.constant 0 : index
    %c0_72 = arith.constant 0 : index
    %106 = vector.load %arg14[%c0_71, %c0_72] : memref<16x32xf32, #tpu.memory_space<vmem>>, vector<16x32xf32>
    tpu.vector_store %arg14[%c0_71, %c0_72], %105 {strides = array<i32>} : memref<16x32xf32, #tpu.memory_space<vmem>>, vector<16x32xf32>,
    %c0_73 = arith.constant 0 : index
    %c0_74 = arith.constant 0 : index
    %107 = tpu.strided_load %arg14[%c0_73, %c0_74] {strides = array<i32: 2, 1>} : memref<16x32xf32, #tpu.memory_space<vmem>>, vector<8x32xf32>
    %c1_75 = arith.constant 1 : index
    %c0_76 = arith.constant 0 : index
    %108 = tpu.strided_load %arg14[%c1_75, %c0_76] {strides = array<i32: 2, 1>} : memref<16x32xf32, #tpu.memory_space<vmem>>, vector<8x32xf32>
    %109 = arith.maximumf %107, %108 : vector<8x32xf32>
    %110 = vector.extract_strided_slice %109 {offsets = [0, 4], sizes = [8, 28], strides = [1, 1]} : vector<8x32xf32> to vector<8x28xf32>
    %111 = vector.extract_strided_slice %109 {offsets = [0, 0], sizes = [8, 4], strides = [1, 1]} : vector<8x32xf32> to vector<8x4xf32>
    %112 = tpu.concatenate %110, %111 in 1 : vector<8x28xf32>, vector<8x4xf32> -> vector<8x32xf32>
    %113 = arith.maximumf %109, %112 : vector<8x32xf32>
    %c0_77 = arith.constant 0 : index
    %c0_78 = arith.constant 0 : index
    %114 = vector.load %arg6[%c0_77, %c0_78] : memref<32x128xf32, #tpu.memory_space<vmem>>, vector<32x128xf32>
    %cst_79 = arith.constant dense<0.000000e+00> : vector<8x128xf32>
    %115 = tpu.matmul %113, %114, %cst_79 {dimension_numbers = #tpu.dot_dimension_numbers<[1], [0], [0], [1], [0, 0, 1, 1], [], []>} : vector<8x32xf32>, vector<32x128xf32>, vector<8x128xf32> -> vector<8x128xf32>
    %c0_80 = arith.constant 0 : index
    %c0_81 = arith.constant 0 : index
    %116 = vector.load %arg7[%c0_80, %c0_81] : memref<1x128xf32, #tpu.memory_space<vmem>>, vector<1x128xf32>
    %117 = vector.broadcast %116 : vector<1x128xf32> to vector<8x128xf32>
    %118 = arith.addf %115, %117 : vector<8x128xf32>
    %cst_82 = arith.constant 0.000000e+00 : f32
    %119 = vector.broadcast %cst_82 : f32 to vector<8x128xf32>
    %120 = arith.maximumf %118, %119 : vector<8x128xf32>
    %c0_83 = arith.constant 0 : index
    %c0_84 = arith.constant 0 : index
    %121 = vector.load %arg8[%c0_83, %c0_84] : memref<128x256xf32, #tpu.memory_space<vmem>>, vector<128x256xf32>
    %cst_85 = arith.constant dense<0.000000e+00> : vector<8x256xf32>
    %122 = tpu.matmul %120, %121, %cst_85 {dimension_numbers = #tpu.dot_dimension_numbers<[1], [0], [0], [1], [0, 0, 1, 1], [], []>} : vector<8x128xf32>, vector<128x256xf32>, vector<8x256xf32> -> vector<8x256xf32>
    %c0_86 = arith.constant 0 : index
    %c0_87 = arith.constant 0 : index
    %123 = vector.load %arg9[%c0_86, %c0_87] : memref<1x256xf32, #tpu.memory_space<vmem>>, vector<1x256xf32>
    %124 = vector.broadcast %123 : vector<1x256xf32> to vector<8x256xf32>
    %125 = arith.addf %122, %124 : vector<8x256xf32>
    %126 = arith.negf %125 : vector<8x256xf32>
    %127 = math.exp %126 : vector<8x256xf32>
    %cst_88 = arith.constant 1.000000e+00 : f32
    %128 = vector.broadcast %cst_88 : f32 to vector<8x256xf32>
    %129 = arith.addf %128, %127 : vector<8x256xf32>
    %130 = arith.divf %128, %129 : vector<8x256xf32>
    %c0_89 = arith.constant 0 : index
    %c0_90 = arith.constant 0 : index
    %c0_91 = arith.constant 0 : index
    %131 = vector.load %arg10[%c0_89, %c0_90, %c0_91] : memref<1x8x256xf32, #tpu.memory_space<vmem>>, vector<1x8x256xf32>
    %132 = vector.shape_cast %131 : vector<1x8x256xf32> to vector<8x256xf32>
    %133 = vector.shape_cast %130 : vector<8x256xf32> to vector<1x8x256xf32>
    tpu.vector_store %arg10[%c0_89, %c0_90, %c0_91], %133 {strides = array<i32>} : memref<1x8x256xf32, #tpu.memory_space<vmem>>, vector<1x8x256xf32>,
    return
  }
  func.func @transform_0(%arg0: i32) -> (i32, i32, i32) {
    %c0_i32 = arith.constant 0 : i32
    %c0_i32_0 = arith.constant 0 : i32
    %c0_i32_1 = arith.constant 0 : i32
    return %arg0, %c0_i32, %c0_i32_0 : i32, i32, i32
  }
  func.func @transform_1(%arg0: i32) -> (i32, i32, i32) {
    %c0_i32 = arith.constant 0 : i32
    %c0_i32_0 = arith.constant 0 : i32
    %c0_i32_1 = arith.constant 0 : i32
    %c0_i32_2 = arith.constant 0 : i32
    return %c0_i32, %c0_i32_0, %c0_i32_1 : i32, i32, i32
  }
  func.func @transform_2(%arg0: i32) -> (i32, i32) {
    %c0_i32 = arith.constant 0 : i32
    %c0_i32_0 = arith.constant 0 : i32
    %c0_i32_1 = arith.constant 0 : i32
    return %c0_i32, %c0_i32_0 : i32, i32
  }
  func.func @transform_3(%arg0: i32) -> (i32, i32, i32) {
    %c0_i32 = arith.constant 0 : i32
    %c0_i32_0 = arith.constant 0 : i32
    %c0_i32_1 = arith.constant 0 : i32
    %c0_i32_2 = arith.constant 0 : i32
    return %c0_i32, %c0_i32_0, %c0_i32_1 : i32, i32, i32
  }
  func.func @transform_4(%arg0: i32) -> (i32, i32) {
    %c0_i32 = arith.constant 0 : i32
    %c0_i32_0 = arith.constant 0 : i32
    %c0_i32_1 = arith.constant 0 : i32
    return %c0_i32, %c0_i32_0 : i32, i32
  }
  func.func @transform_5(%arg0: i32) -> (i32, i32) {
    %c0_i32 = arith.constant 0 : i32
    %c0_i32_0 = arith.constant 0 : i32
    %c0_i32_1 = arith.constant 0 : i32
    return %c0_i32, %c0_i32_0 : i32, i32
  }
  func.func @transform_6(%arg0: i32) -> (i32, i32) {
    %c0_i32 = arith.constant 0 : i32
    %c0_i32_0 = arith.constant 0 : i32
    %c0_i32_1 = arith.constant 0 : i32
    return %c0_i32, %c0_i32_0 : i32, i32
  }
  func.func @transform_7(%arg0: i32) -> (i32, i32) {
    %c0_i32 = arith.constant 0 : i32
    %c0_i32_0 = arith.constant 0 : i32
    %c0_i32_1 = arith.constant 0 : i32
    return %c0_i32, %c0_i32_0 : i32, i32
  }
  func.func @transform_8(%arg0: i32) -> (i32, i32) {
    %c0_i32 = arith.constant 0 : i32
    %c0_i32_0 = arith.constant 0 : i32
    %c0_i32_1 = arith.constant 0 : i32
    return %c0_i32, %c0_i32_0 : i32, i32
  }
  func.func @transform_9(%arg0: i32) -> (i32, i32, i32) {
    %c0_i32 = arith.constant 0 : i32
    %c0_i32_0 = arith.constant 0 : i32
    %c0_i32_1 = arith.constant 0 : i32
    return %arg0, %c0_i32, %c0_i32_0 : i32, i32, i32
  }
}

</mosaic_0001>

<llo_original>
// kernel: tile.23
$region0: #{tile.23}
  #allocation0 [shape = 's32[1]{0}', space=sflag, size = 0x4, scoped, tag = 'scoped memory for tile.23']
  %s0 = inlined_call_operand.vmem [shape: f32[8], index: 0, kind: input, shape index: {}]
  %s1 = inlined_call_operand.vmem [shape: f32[16,8], index: 1, kind: output, shape index: {}]
  // Predicated region
  $region2: #{tile.23} parent=0 // pred_check
    _
  $region3: #{tile.23} parent=0 // pred_check_branch
    %3 = sbr.rel (0) target = $region5
  $region4: #{tile.23} parent=0 // pred_region
    _
  $region5: #{tile.23} parent=0 // pred_fallthru
    _
  %v4 = vld [vmem:[%s0] ss:$0 sm:$0xff]
  %5 = vst [vmem:[%s1] sm:$0xff] %v4
  %s6 = scalar_lea.vmem %s1, 8
  %7 = vst [vmem:[%s6] sm:$0xff] %v4

// kernel: tile.24
$region0: #{tile.24}
  %s0 = inlined_call_operand.vmem [shape: f32[16,8], index: 0, kind: input, shape index: {}]
  %s1 = inlined_call_operand.vmem [shape: f32[1,128], index: 1, kind: output, shape index: {}]
  $region1: #{tile.24} parent=0
    #allocation0 [shape = 'u8[4096]{0}', space=vmem, size = 0x1000, scoped, tag = 'scoped mem for output reshape']
    %v2 = vld [vmem:[%s0] sm:$0x1]
    %vm3 = vcmask 64512
    %4 = vst.msk [vmem:[#allocation0] sm:$0x1] %vm3, %v2
    %s5 = scalar_lea.vmem %s0, 15
    %v6 = vld [vmem:[%s5] sm:$0x1]
    %7 = vrot.lane.b32.xlu0 %v6, 120
    %v8 = vpop.permute.xlu0 %7
    %vm9 = vcmask 1048512
    %10 = vst.msk [vmem:[#allocation0] sm:$0x1] %vm9, %v8
    %s11 = scalar_lea.vmem %s0, 14
    %v12 = vld [vmem:[%s11] sm:$0x1]
    %13 = vrot.lane.b32.xlu0 %v12, 112
    %v14 = vpop.permute.xlu0 %13
    %vm15 = vcmask 982912
    %16 = vst.msk [vmem:[#allocation0] sm:$0x1] %vm15, %v14
    %s17 = scalar_lea.vmem %s0, 13
    %v18 = vld [vmem:[%s17] sm:$0x1]
    %19 = vrot.lane.b32.xlu0 %v18, 104
    %v20 = vpop.permute.xlu0 %19
    %vm21 = vcmask 917312
    %22 = vst.msk [vmem:[#allocation0] sm:$0x1] %vm21, %v20
    %s23 = scalar_lea.vmem %s0, 12
    %v24 = vld [vmem:[%s23] sm:$0x1]
    %25 = vrot.lane.b32.xlu0 %v24, 96
    %v26 = vpop.permute.xlu0 %25
    %vm27 = vcmask 851712
    %28 = vst.msk [vmem:[#allocation0] sm:$0x1] %vm27, %v26
    %s29 = scalar_lea.vmem %s0, 11
    %v30 = vld [vmem:[%s29] sm:$0x1]
    %31 = vrot.lane.b32.xlu0 %v30, 88
    %v32 = vpop.permute.xlu0 %31
    %vm33 = vcmask 786112
    %34 = vst.msk [vmem:[#allocation0] sm:$0x1] %vm33, %v32
    %s35 = scalar_lea.vmem %s0, 10
    %v36 = vld [vmem:[%s35] sm:$0x1]
    %37 = vrot.lane.b32.xlu0 %v36, 80
    %v38 = vpop.permute.xlu0 %37
    %vm39 = vcmask 720512
    %40 = vst.msk [vmem:[#allocation0] sm:$0x1] %vm39, %v38
    %s41 = scalar_lea.vmem %s0, 9
    %v42 = vld [vmem:[%s41] sm:$0x1]
    %43 = vrot.lane.b32.xlu0 %v42, 72
    %v44 = vpop.permute.xlu0 %43
    %vm45 = vcmask 654912
    %46 = vst.msk [vmem:[#allocation0] sm:$0x1] %vm45, %v44
    %s47 = scalar_lea.vmem %s0, 8
    %v48 = vld [vmem:[%s47] sm:$0x1]
    %49 = vrot.lane.b32.xlu0 %v48, 64
    %v50 = vpop.permute.xlu0 %49
    %vm51 = vcmask 589312
    %52 = vst.msk [vmem:[#allocation0] sm:$0x1] %vm51, %v50
    %s53 = scalar_lea.vmem %s0, 7
    %v54 = vld [vmem:[%s53] sm:$0x1]
    %55 = vrot.lane.b32.xlu0 %v54, 56
    %v56 = vpop.permute.xlu0 %55
    %vm57 = vcmask 523712
    %58 = vst.msk [vmem:[#allocation0] sm:$0x1] %vm57, %v56
    %s59 = scalar_lea.vmem %s0, 6
    %v60 = vld [vmem:[%s59] sm:$0x1]
    %61 = vrot.lane.b32.xlu0 %v60, 48
    %v62 = vpop.permute.xlu0 %61
    %vm63 = vcmask 458112
    %64 = vst.msk [vmem:[#allocation0] sm:$0x1] %vm63, %v62
    %s65 = scalar_lea.vmem %s0, 5
    %v66 = vld [vmem:[%s65] sm:$0x1]
    %67 = vrot.lane.b32.xlu0 %v66, 40
    %v68 = vpop.permute.xlu0 %67
    %vm69 = vcmask 392512
    %70 = vst.msk [vmem:[#allocation0] sm:$0x1] %vm69, %v68
    %s71 = scalar_lea.vmem %s0, 4
    %v72 = vld [vmem:[%s71] sm:$0x1]
    %73 = vrot.lane.b32.xlu0 %v72, 32
    %v74 = vpop.permute.xlu0 %73
    %vm75 = vcmask 326912
    %76 = vst.msk [vmem:[#allocation0] sm:$0x1] %vm75, %v74
    %s77 = scalar_lea.vmem %s0, 3
    %v78 = vld [vmem:[%s77] sm:$0x1]
    %79 = vrot.lane.b32.xlu0 %v78, 24
    %v80 = vpop.permute.xlu0 %79
    %vm81 = vcmask 261312
    %82 = vst.msk [vmem:[#allocation0] sm:$0x1] %vm81, %v80
    %s83 = scalar_lea.vmem %s0, 2
    %v84 = vld [vmem:[%s83] sm:$0x1]
    %85 = vrot.lane.b32.xlu0 %v84, 16
    %v86 = vpop.permute.xlu0 %85
    %vm87 = vcmask 195712
    %88 = vst.msk [vmem:[#allocation0] sm:$0x1] %vm87, %v86
    %s89 = scalar_lea.vmem %s0, 1
    %v90 = vld [vmem:[%s89] sm:$0x1]
    %91 = vrot.lane.b32.xlu0 %v90, 8
    %v92 = vpop.permute.xlu0 %91
    %vm93 = vcmask 130112
    %94 = vst.msk [vmem:[#allocation0] sm:$0x1] %vm93, %v92
    %s96 = sshllo.u32 0, 1
    %v98 = vld [vmem:[#allocation0] sm:%s96]
    %s99 = sshllo.u32 0, 1
    %100 = vst [vmem:[%s1] sm:%s99] %v98

// kernel: tile.28
$region0: #{tile.28}
  #allocation0 [shape = 's32[1]{0}', space=sflag, size = 0x4, scoped, tag = 'scoped memory for tile.28']
  %s0 = inlined_call_operand.vmem [shape: f32[4], index: 0, kind: input, shape index: {}]
  %s1 = inlined_call_operand.vmem [shape: f32[8,4], index: 1, kind: output, shape index: {}]
  // Predicated region
  $region2: #{tile.28} parent=0 // pred_check
    _
  $region3: #{tile.28} parent=0 // pred_check_branch
    %3 = sbr.rel (0) target = $region5
  $region4: #{tile.28} parent=0 // pred_region
    _
  $region5: #{tile.28} parent=0 // pred_fallthru
    _
  %v4 = vld [vmem:[%s0] ss:$0 sm:$0xff]
  %5 = vst [vmem:[%s1] sm:$0xff] %v4

// kernel: tile.29
$region0: #{tile.29}
  %s0 = inlined_call_operand.vmem [shape: f32[8,4], index: 0, kind: input, shape index: {}]
  %s1 = inlined_call_operand.vmem [shape: f32[1,32], index: 1, kind: output, shape index: {}]
  $region1: #{tile.29} parent=0
    #allocation0 [shape = 'u8[4096]{0}', space=vmem, size = 0x1000, scoped, tag = 'scoped mem for output reshape']
    %v2 = vld [vmem:[%s0] sm:$0x1]
    %vm3 = vcmask 31744
    %4 = vst.msk [vmem:[#allocation0] sm:$0x1] %vm3, %v2
    %s5 = scalar_lea.vmem %s0, 7
    %v6 = vld [vmem:[%s5] sm:$0x1]
    %7 = vrot.lane.b32.xlu0 %v6, 28
    %v8 = vpop.permute.xlu0 %7
    %vm9 = vcmask 261344
    %10 = vst.msk [vmem:[#allocation0] sm:$0x1] %vm9, %v8
    %s11 = scalar_lea.vmem %s0, 6
    %v12 = vld [vmem:[%s11] sm:$0x1]
    %13 = vrot.lane.b32.xlu0 %v12, 24
    %v14 = vpop.permute.xlu0 %13
    %vm15 = vcmask 228544
    %16 = vst.msk [vmem:[#allocation0] sm:$0x1] %vm15, %v14
    %s17 = scalar_lea.vmem %s0, 5
    %v18 = vld [vmem:[%s17] sm:$0x1]
    %19 = vrot.lane.b32.xlu0 %v18, 20
    %v20 = vpop.permute.xlu0 %19
    %vm21 = vcmask 195744
    %22 = vst.msk [vmem:[#allocation0] sm:$0x1] %vm21, %v20
    %s23 = scalar_lea.vmem %s0, 4
    %v24 = vld [vmem:[%s23] sm:$0x1]
    %25 = vrot.lane.b32.xlu0 %v24, 16
    %v26 = vpop.permute.xlu0 %25
    %vm27 = vcmask 162944
    %28 = vst.msk [vmem:[#allocation0] sm:$0x1] %vm27, %v26
    %s29 = scalar_lea.vmem %s0, 3
    %v30 = vld [vmem:[%s29] sm:$0x1]
    %31 = vrot.lane.b32.xlu0 %v30, 12
    %v32 = vpop.permute.xlu0 %31
    %vm33 = vcmask 130144
    %34 = vst.msk [vmem:[#allocation0] sm:$0x1] %vm33, %v32
    %s35 = scalar_lea.vmem %s0, 2
    %v36 = vld [vmem:[%s35] sm:$0x1]
    %37 = vrot.lane.b32.xlu0 %v36, 8
    %v38 = vpop.permute.xlu0 %37
    %vm39 = vcmask 97344
    %40 = vst.msk [vmem:[#allocation0] sm:$0x1] %vm39, %v38
    %s41 = scalar_lea.vmem %s0, 1
    %v42 = vld [vmem:[%s41] sm:$0x1]
    %43 = vrot.lane.b32.xlu0 %v42, 4
    %v44 = vpop.permute.xlu0 %43
    %vm45 = vcmask 64544
    %46 = vst.msk [vmem:[#allocation0] sm:$0x1] %vm45, %v44
    %s48 = sshllo.u32 0, 1
    %v50 = vld [vmem:[#allocation0] sm:%s48]
    %s51 = sshllo.u32 0, 1
    %52 = vst [vmem:[%s1] sm:%s51] %v50

// kernel: mul.165
$region0: #{mul.165}
  %s0 = inlined_call_operand.vmem [shape: f32[4,2,8], index: 0, kind: input, shape index: {}]
  %s1 = inlined_call_operand.vmem [shape: f32[4,16], index: 1, kind: output, shape index: {}]
  $region1: #{mul.165} parent=0
    #allocation0 [shape = 'u8[4096]{0}', space=vmem, size = 0x1000, scoped, tag = 'scoped mem for output reshape']
    #allocation1 [shape = 'u8[16384]{0}', space=vmem, size = 0x4000, scoped, tag = 'scoped mem for input reshape']
    %s3 = sshllo.u32 0, 2
    %s4 = smul.addr 2, 3
    %s5 = scalar_lea.vmem %s0, %s4
    %v6 = vld [vmem:[%s5] sm:%s3]
    %s7 = scalar_lea.vmem [#allocation1], 24
    %8 = vst [vmem:[%s7] sm:%s3] %v6
    %s9 = smul.addr 2, 2
    %s10 = scalar_lea.vmem %s0, %s9
    %v11 = vld [vmem:[%s10] sm:%s3]
    %s12 = scalar_lea.vmem [#allocation1], 16
    %13 = vst [vmem:[%s12] sm:%s3] %v11
    %s14 = scalar_lea.vmem %s0, 2
    %v15 = vld [vmem:[%s14] sm:%s3]
    %s16 = scalar_lea.vmem [#allocation1], 8
    %17 = vst [vmem:[%s16] sm:%s3] %v15
    %v18 = vld [vmem:[%s0] sm:%s3]
    %19 = vst [vmem:[#allocation1] sm:%s3] %v18
    %v20 = vld [vmem:[#allocation1] ss:$8 sm:$0xf]
    %vm21 = vcmask 64512
    %22 = vst.msk [vmem:[#allocation0] sm:$0xf] %vm21, %v20
    %s23 = scalar_lea.vmem [#allocation1], 1
    %v24 = vld [vmem:[%s23] ss:$8 sm:$0xf]
    %25 = vrot.lane.b32.xlu0 %v24, 8
    %v26 = vpop.permute.xlu0 %25
    %vm27 = vcmask 130112
    %28 = vst.msk [vmem:[#allocation0] sm:$0xf] %vm27, %v26
    %s30 = sshllo.u32 0, 4
    %v32 = vld [vmem:[#allocation0] sm:%s30]
    %s33 = sshllo.u32 0, 4
    %34 = vst [vmem:[%s1] sm:%s33] %v32

// kernel: tile.38
$region0: #{tile.38}
  #allocation0 [shape = 's32[1]{0}', space=sflag, size = 0x4, scoped, tag = 'scoped memory for tile.38']
  %s0 = inlined_call_operand.vmem [shape: f32[4], index: 0, kind: input, shape index: {}]
  %s1 = inlined_call_operand.vmem [shape: f32[64,4], index: 1, kind: output, shape index: {}]
  // Predicated region
  $region2: #{tile.38} parent=0 // pred_check
    _
  $region3: #{tile.38} parent=0 // pred_check_branch
    %3 = sbr.rel (0) target = $region5
  $region4: #{tile.38} parent=0 // pred_region
    _
  $region5: #{tile.38} parent=0 // pred_fallthru
    _
  %v4 = vld [vmem:[%s0] ss:$0 sm:$0xff]
  %5 = vst [vmem:[%s1] sm:$0xff] %v4
  %s6 = scalar_lea.vmem %s1, 8
  %7 = vst [vmem:[%s6] sm:$0xff] %v4
  %s8 = scalar_lea.vmem %s1, 16
  %9 = vst [vmem:[%s8] sm:$0xff] %v4
  %s10 = scalar_lea.vmem %s1, 24
  %11 = vst [vmem:[%s10] sm:$0xff] %v4
  %s12 = scalar_lea.vmem %s1, 32
  %13 = vst [vmem:[%s12] sm:$0xff] %v4
  %s14 = scalar_lea.vmem %s1, 40
  %15 = vst [vmem:[%s14] sm:$0xff] %v4
  %s16 = scalar_lea.vmem %s1, 48
  %17 = vst [vmem:[%s16] sm:$0xff] %v4
  %s18 = scalar_lea.vmem %s1, 56
  %19 = vst [vmem:[%s18] sm:$0xff] %v4

// kernel: tile.39
$region0: #{tile.39}
  %s0 = inlined_call_operand.vmem [shape: f32[64,4], index: 0, kind: input, shape index: {}]
  %s1 = inlined_call_operand.vmem [shape: f32[1,256], index: 1, kind: output, shape index: {}]
  $region1: #{tile.39} parent=0
    #allocation0 [shape = 'u8[8192]{0}', space=vmem, size = 0x2000, scoped, tag = 'scoped mem for output reshape']
    %v2 = vld [vmem:[%s0] sm:$0x1]
    %s3 = scalar_lea.vmem %s0, 31
    %v4 = vld [vmem:[%s3] sm:$0x2]
    %vm5 = vcmask 1041409
    %v6 = vsel %vm5, %v4, %v2
    %vm7 = vcmask 31744
    %8 = vst.msk [vmem:[#allocation0] ss:$8 sm:$0x3] %vm7, %v6
    %s9 = scalar_lea.vmem %s0, 31
    %v10 = vld [vmem:[%s9] sm:$0x1]
    %s11 = scalar_lea.vmem %s0, 62
    %v12 = vld [vmem:[%s11] sm:$0x2]
    %vm13 = vcmask 1041409
    %v14 = vsel %vm13, %v12, %v10
    %15 = vrot.lane.b32.xlu0 %v14, 124
    %v16 = vpop.permute.xlu0 %15
    %vm17 = vcmask 1048544
    %18 = vst.msk [vmem:[#allocation0] ss:$8 sm:$0x3] %vm17, %v16
    %s19 = scalar_lea.vmem %s0, 30
    %v20 = vld [vmem:[%s19] sm:$0x1]
    %s21 = scalar_lea.vmem %s0, 61
    %v22 = vld [vmem:[%s21] sm:$0x2]
    %vm23 = vcmask 1041409
    %v24 = vsel %vm23, %v22, %v20
    %25 = vrot.lane.b32.xlu0 %v24, 120
    %v26 = vpop.permute.xlu0 %25
    %vm27 = vcmask 1015744
    %28 = vst.msk [vmem:[#allocation0] ss:$8 sm:$0x3] %vm27, %v26
    %s29 = scalar_lea.vmem %s0, 29
    %v30 = vld [vmem:[%s29] sm:$0x1]
    %s31 = scalar_lea.vmem %s0, 60
    %v32 = vld [vmem:[%s31] sm:$0x2]
    %vm33 = vcmask 1041409
    %v34 = vsel %vm33, %v32, %v30
    %35 = vrot.lane.b32.xlu0 %v34, 116
    %v36 = vpop.permute.xlu0 %35
    %vm37 = vcmask 982944
    %38 = vst.msk [vmem:[#allocation0] ss:$8 sm:$0x3] %vm37, %v36
    %s39 = scalar_lea.vmem %s0, 28
    %v40 = vld [vmem:[%s39] sm:$0x1]
    %s41 = scalar_lea.vmem %s0, 59
    %v42 = vld [vmem:[%s41] sm:$0x2]
    %vm43 = vcmask 1041409
    %v44 = vsel %vm43, %v42, %v40
    %45 = vrot.lane.b32.xlu0 %v44, 112
    %v46 = vpop.permute.xlu0 %45
    %vm47 = vcmask 950144
    %48 = vst.msk [vmem:[#allocation0] ss:$8 sm:$0x3] %vm47, %v46
    %s49 = scalar_lea.vmem %s0, 27
    %v50 = vld [vmem:[%s49] sm:$0x1]
    %s51 = scalar_lea.vmem %s0, 58
    %v52 = vld [vmem:[%s51] sm:$0x2]
    %vm53 = vcmask 1041409
    %v54 = vsel %vm53, %v52, %v50
    %55 = vrot.lane.b32.xlu0 %v54, 108
    %v56 = vpop.permute.xlu0 %55
    %vm57 = vcmask 917344
    %58 = vst.msk [vmem:[#allocation0] ss:$8 sm:$0x3] %vm57, %v56
    %s59 = scalar_lea.vmem %s0, 26
    %v60 = vld [vmem:[%s59] sm:$0x1]
    %s61 = scalar_lea.vmem %s0, 57
    %v62 = vld [vmem:[%s61] sm:$0x2]
    %vm63 = vcmask 1041409
    %v64 = vsel %vm63, %v62, %v60
    %65 = vrot.lane.b32.xlu0 %v64, 104
    %v66 = vpop.permute.xlu0 %65
    %vm67 = vcmask 884544
    %68 = vst.msk [vmem:[#allocation0] ss:$8 sm:$0x3] %vm67, %v66
    %s69 = scalar_lea.vmem %s0, 25
    %v70 = vld [vmem:[%s69] sm:$0x1]
    %s71 = scalar_lea.vmem %s0, 56
    %v72 = vld [vmem:[%s71] sm:$0x2]
    %vm73 = vcmask 1041409
    %v74 = vsel %vm73, %v72, %v70
    %75 = vrot.lane.b32.xlu0 %v74, 100
    %v76 = vpop.permute.xlu0 %75
    %vm77 = vcmask 851744
    %78 = vst.msk [vmem:[#allocation0] ss:$8 sm:$0x3] %vm77, %v76
    %s79 = scalar_lea.vmem %s0, 24
    %v80 = vld [vmem:[%s79] sm:$0x1]
    %s81 = scalar_lea.vmem %s0, 55
    %v82 = vld [vmem:[%s81] sm:$0x2]
    %vm83 = vcmask 1041409
    %v84 = vsel %vm83, %v82, %v80
    %85 = vrot.lane.b32.xlu0 %v84, 96
    %v86 = vpop.permute.xlu0 %85
    %vm87 = vcmask 818944
    %88 = vst.msk [vmem:[#allocation0] ss:$8 sm:$0x3] %vm87, %v86
    %s89 = scalar_lea.vmem %s0, 23
    %v90 = vld [vmem:[%s89] sm:$0x1]
    %s91 = scalar_lea.vmem %s0, 54
    %v92 = vld [vmem:[%s91] sm:$0x2]
    %vm93 = vcmask 1041409
    %v94 = vsel %vm93, %v92, %v90
    %95 = vrot.lane.b32.xlu0 %v94, 92
    %v96 = vpop.permute.xlu0 %95
    %vm97 = vcmask 786144
    %98 = vst.msk [vmem:[#allocation0] ss:$8 sm:$0x3] %vm97, %v96
    %s99 = scalar_lea.vmem %s0, 22
    %v100 = vld [vmem:[%s99] sm:$0x1]
    %s101 = scalar_lea.vmem %s0, 53
    %v102 = vld [vmem:[%s101] sm:$0x2]
    %vm103 = vcmask 1041409
    %v104 = vsel %vm103, %v102, %v100
    %105 = vrot.lane.b32.xlu0 %v104, 88
    %v106 = vpop.permute.xlu0 %105
    %vm107 = vcmask 753344
    %108 = vst.msk [vmem:[#allocation0] ss:$8 sm:$0x3] %vm107, %v106
    %s109 = scalar_lea.vmem %s0, 21
    %v110 = vld [vmem:[%s109] sm:$0x1]
    %s111 = scalar_lea.vmem %s0, 52
    %v112 = vld [vmem:[%s111] sm:$0x2]
    %vm113 = vcmask 1041409
    %v114 = vsel %vm113, %v112, %v110
    %115 = vrot.lane.b32.xlu0 %v114, 84
    %v116 = vpop.permute.xlu0 %115
    %vm117 = vcmask 720544
    %118 = vst.msk [vmem:[#allocation0] ss:$8 sm:$0x3] %vm117, %v116
    %s119 = scalar_lea.vmem %s0, 20
    %v120 = vld [vmem:[%s119] sm:$0x1]
    %s121 = scalar_lea.vmem %s0, 51
    %v122 = vld [vmem:[%s121] sm:$0x2]
    %vm123 = vcmask 1041409
    %v124 = vsel %vm123, %v122, %v120
    %125 = vrot.lane.b32.xlu0 %v124, 80
    %v126 = vpop.permute.xlu0 %125
    %vm127 = vcmask 687744
    %128 = vst.msk [vmem:[#allocation0] ss:$8 sm:$0x3] %vm127, %v126
    %s129 = scalar_lea.vmem %s0, 19
    %v130 = vld [vmem:[%s129] sm:$0x1]
    %s131 = scalar_lea.vmem %s0, 50
    %v132 = vld [vmem:[%s131] sm:$0x2]
    %vm133 = vcmask 1041409
    %v134 = vsel %vm133, %v132, %v130
    %135 = vrot.lane.b32.xlu0 %v134, 76
    %v136 = vpop.permute.xlu0 %135
    %vm137 = vcmask 654944
    %138 = vst.msk [vmem:[#allocation0] ss:$8 sm:$0x3] %vm137, %v136
    %s139 = scalar_lea.vmem %s0, 18
    %v140 = vld [vmem:[%s139] sm:$0x1]
    %s141 = scalar_lea.vmem %s0, 49
    %v142 = vld [vmem:[%s141] sm:$0x2]
    %vm143 = vcmask 1041409
    %v144 = vsel %vm143, %v142, %v140
    %145 = vrot.lane.b32.xlu0 %v144, 72
    %v146 = vpop.permute.xlu0 %145
    %vm147 = vcmask 622144
    %148 = vst.msk [vmem:[#allocation0] ss:$8 sm:$0x3] %vm147, %v146
    %s149 = scalar_lea.vmem %s0, 17
    %v150 = vld [vmem:[%s149] sm:$0x1]
    %s151 = scalar_lea.vmem %s0, 48
    %v152 = vld [vmem:[%s151] sm:$0x2]
    %vm153 = vcmask 1041409
    %v154 = vsel %vm153, %v152, %v150
    %155 = vrot.lane.b32.xlu0 %v154, 68
    %v156 = vpop.permute.xlu0 %155
    %vm157 = vcmask 589344
    %158 = vst.msk [vmem:[#allocation0] ss:$8 sm:$0x3] %vm157, %v156
    %s159 = scalar_lea.vmem %s0, 16
    %v160 = vld [vmem:[%s159] sm:$0x1]
    %s161 = scalar_lea.vmem %s0, 47
    %v162 = vld [vmem:[%s161] sm:$0x2]
    %vm163 = vcmask 1041409
    %v164 = vsel %vm163, %v162, %v160
    %165 = vrot.lane.b32.xlu0 %v164, 64
    %v166 = vpop.permute.xlu0 %165
    %vm167 = vcmask 556544
    %168 = vst.msk [vmem:[#allocation0] ss:$8 sm:$0x3] %vm167, %v166
    %s169 = scalar_lea.vmem %s0, 15
    %v170 = vld [vmem:[%s169] sm:$0x1]
    %s171 = scalar_lea.vmem %s0, 46
    %v172 = vld [vmem:[%s171] sm:$0x2]
    %vm173 = vcmask 1041409
    %v174 = vsel %vm173, %v172, %v170
    %175 = vrot.lane.b32.xlu0 %v174, 60
    %v176 = vpop.permute.xlu0 %175
    %vm177 = vcmask 523744
    %178 = vst.msk [vmem:[#allocation0] ss:$8 sm:$0x3] %vm177, %v176
    %s179 = scalar_lea.vmem %s0, 14
    %v180 = vld [vmem:[%s179] sm:$0x1]
    %s181 = scalar_lea.vmem %s0, 45
    %v182 = vld [vmem:[%s181] sm:$0x2]
    %vm183 = vcmask 1041409
    %v184 = vsel %vm183, %v182, %v180
    %185 = vrot.lane.b32.xlu0 %v184, 56
    %v186 = vpop.permute.xlu0 %185
    %vm187 = vcmask 490944
    %188 = vst.msk [vmem:[#allocation0] ss:$8 sm:$0x3] %vm187, %v186
    %s189 = scalar_lea.vmem %s0, 13
    %v190 = vld [vmem:[%s189] sm:$0x1]
    %s191 = scalar_lea.vmem %s0, 44
    %v192 = vld [vmem:[%s191] sm:$0x2]
    %vm193 = vcmask 1041409
    %v194 = vsel %vm193, %v192, %v190
    %195 = vrot.lane.b32.xlu0 %v194, 52
    %v196 = vpop.permute.xlu0 %195
    %vm197 = vcmask 458144
    %198 = vst.msk [vmem:[#allocation0] ss:$8 sm:$0x3] %vm197, %v196
    %s199 = scalar_lea.vmem %s0, 12
    %v200 = vld [vmem:[%s199] sm:$0x1]
    %s201 = scalar_lea.vmem %s0, 43
    %v202 = vld [vmem:[%s201] sm:$0x2]
    %vm203 = vcmask 1041409
    %v204 = vsel %vm203, %v202, %v200
    %205 = vrot.lane.b32.xlu0 %v204, 48
    %v206 = vpop.permute.xlu0 %205
    %vm207 = vcmask 425344
    %208 = vst.msk [vmem:[#allocation0] ss:$8 sm:$0x3] %vm207, %v206
    %s209 = scalar_lea.vmem %s0, 11
    %v210 = vld [vmem:[%s209] sm:$0x1]
    %s211 = scalar_lea.vmem %s0, 42
    %v212 = vld [vmem:[%s211] sm:$0x2]
    %vm213 = vcmask 1041409
    %v214 = vsel %vm213, %v212, %v210
    %215 = vrot.lane.b32.xlu0 %v214, 44
    %v216 = vpop.permute.xlu0 %215
    %vm217 = vcmask 392544
    %218 = vst.msk [vmem:[#allocation0] ss:$8 sm:$0x3] %vm217, %v216
    %s219 = scalar_lea.vmem %s0, 10
    %v220 = vld [vmem:[%s219] sm:$0x1]
    %s221 = scalar_lea.vmem %s0, 41
    %v222 = vld [vmem:[%s221] sm:$0x2]
    %vm223 = vcmask 1041409
    %v224 = vsel %vm223, %v222, %v220
    %225 = vrot.lane.b32.xlu0 %v224, 40
    %v226 = vpop.permute.xlu0 %225
    %vm227 = vcmask 359744
    %228 = vst.msk [vmem:[#allocation0] ss:$8 sm:$0x3] %vm227, %v226
    %s229 = scalar_lea.vmem %s0, 9
    %v230 = vld [vmem:[%s229] sm:$0x1]
    %s231 = scalar_lea.vmem %s0, 40
    %v232 = vld [vmem:[%s231] sm:$0x2]
    %vm233 = vcmask 1041409
    %v234 = vsel %vm233, %v232, %v230
    %235 = vrot.lane.b32.xlu0 %v234, 36
    %v236 = vpop.permute.xlu0 %235
    %vm237 = vcmask 326944
    %238 = vst.msk [vmem:[#allocation0] ss:$8 sm:$0x3] %vm237, %v236
    %s239 = scalar_lea.vmem %s0, 8
    %v240 = vld [vmem:[%s239] sm:$0x1]
    %s241 = scalar_lea.vmem %s0, 39
    %v242 = vld [vmem:[%s241] sm:$0x2]
    %vm243 = vcmask 1041409
    %v244 = vsel %vm243, %v242, %v240
    %245 = vrot.lane.b32.xlu0 %v244, 32
    %v246 = vpop.permute.xlu0 %245
    %vm247 = vcmask 294144
    %248 = vst.msk [vmem:[#allocation0] ss:$8 sm:$0x3] %vm247, %v246
    %s249 = scalar_lea.vmem %s0, 7
    %v250 = vld [vmem:[%s249] sm:$0x1]
    %s251 = scalar_lea.vmem %s0, 38
    %v252 = vld [vmem:[%s251] sm:$0x2]
    %vm253 = vcmask 1041409
    %v254 = vsel %vm253, %v252, %v250
    %255 = vrot.lane.b32.xlu0 %v254, 28
    %v256 = vpop.permute.xlu0 %255
    %vm257 = vcmask 261344
    %258 = vst.msk [vmem:[#allocation0] ss:$8 sm:$0x3] %vm257, %v256
    %s259 = scalar_lea.vmem %s0, 6
    %v260 = vld [vmem:[%s259] sm:$0x1]
    %s261 = scalar_lea.vmem %s0, 37
    %v262 = vld [vmem:[%s261] sm:$0x2]
    %vm263 = vcmask 1041409
    %v264 = vsel %vm263, %v262, %v260
    %265 = vrot.lane.b32.xlu0 %v264, 24
    %v266 = vpop.permute.xlu0 %265
    %vm267 = vcmask 228544
    %268 = vst.msk [vmem:[#allocation0] ss:$8 sm:$0x3] %vm267, %v266
    %s269 = scalar_lea.vmem %s0, 5
    %v270 = vld [vmem:[%s269] sm:$0x1]
    %s271 = scalar_lea.vmem %s0, 36
    %v272 = vld [vmem:[%s271] sm:$0x2]
    %vm273 = vcmask 1041409
    %v274 = vsel %vm273, %v272, %v270
    %275 = vrot.lane.b32.xlu0 %v274, 20
    %v276 = vpop.permute.xlu0 %275
    %vm277 = vcmask 195744
    %278 = vst.msk [vmem:[#allocation0] ss:$8 sm:$0x3] %vm277, %v276
    %s279 = scalar_lea.vmem %s0, 4
    %v280 = vld [vmem:[%s279] sm:$0x1]
    %s281 = scalar_lea.vmem %s0, 35
    %v282 = vld [vmem:[%s281] sm:$0x2]
    %vm283 = vcmask 1041409
    %v284 = vsel %vm283, %v282, %v280
    %285 = vrot.lane.b32.xlu0 %v284, 16
    %v286 = vpop.permute.xlu0 %285
    %vm287 = vcmask 162944
    %288 = vst.msk [vmem:[#allocation0] ss:$8 sm:$0x3] %vm287, %v286
    %s289 = scalar_lea.vmem %s0, 3
    %v290 = vld [vmem:[%s289] sm:$0x1]
    %s291 = scalar_lea.vmem %s0, 34
    %v292 = vld [vmem:[%s291] sm:$0x2]
    %vm293 = vcmask 1041409
    %v294 = vsel %vm293, %v292, %v290
    %295 = vrot.lane.b32.xlu0 %v294, 12
    %v296 = vpop.permute.xlu0 %295
    %vm297 = vcmask 130144
    %298 = vst.msk [vmem:[#allocation0] ss:$8 sm:$0x3] %vm297, %v296
    %s299 = scalar_lea.vmem %s0, 2
    %v300 = vld [vmem:[%s299] sm:$0x1]
    %s301 = scalar_lea.vmem %s0, 33
    %v302 = vld [vmem:[%s301] sm:$0x2]
    %vm303 = vcmask 1041409
    %v304 = vsel %vm303, %v302, %v300
    %305 = vrot.lane.b32.xlu0 %v304, 8
    %v306 = vpop.permute.xlu0 %305
    %vm307 = vcmask 97344
    %308 = vst.msk [vmem:[#allocation0] ss:$8 sm:$0x3] %vm307, %v306
    %s309 = scalar_lea.vmem %s0, 1
    %v310 = vld [vmem:[%s309] sm:$0x1]
    %s311 = scalar_lea.vmem %s0, 32
    %v312 = vld [vmem:[%s311] sm:$0x2]
    %vm313 = vcmask 1041409
    %v314 = vsel %vm313, %v312, %v310
    %315 = vrot.lane.b32.xlu0 %v314, 4
    %v316 = vpop.permute.xlu0 %315
    %vm317 = vcmask 64544
    %318 = vst.msk [vmem:[#allocation0] ss:$8 sm:$0x3] %vm317, %v316
    %s320 = sshllo.u32 0, 1
    %v322 = vld [vmem:[#allocation0] sm:%s320]
    %s323 = sshllo.u32 0, 1
    %324 = vst [vmem:[%s1] sm:%s323] %v322
    %s325 = scalar_lea.vmem [#allocation0], 8
    %v326 = vld [vmem:[%s325] sm:%s320]
    %s327 = sshllo.u32 0, 1
    %s328 = scalar_lea.vmem %s1, 1
    %329 = vst [vmem:[%s328] sm:%s327] %v326

// kernel: convolutional_ae_forward.1
$region0: #{convolutional_ae_forward.1}
  #allocation0 [shape = 'u32[]', space=smem, size = 0x4, offset = 0x4, fixed_abs, tag = 'smem constant byte address 0x4 - core index']
  #allocation1 [shape = 'u32[144,128]{1,0:T(1,128)}', space=vmem, size = 0x12000, scoped, tag = 'internal scratch']
  #allocation2 [shape = 'f32[34,64]{1,0:T(8,128)}', space=vmem, size = 0x5000, scoped, tag = 'scratch operand']
  #allocation3 [shape = 'f32[32,128]{1,0:T(8,128)}', space=vmem, size = 0x4000, scoped, tag = 'scratch operand']
  #allocation4 [shape = 'f32[18,128]{1,0:T(8,128)}', space=vmem, size = 0x3000, scoped, tag = 'scratch operand']
  #allocation5 [shape = 'f32[16,32]{1,0:T(8,128)}', space=vmem, size = 0x2000, scoped, tag = 'scratch operand']
  %s0 = inlined_call_operand.vmem [shape: f32[1,32,64], index: 0, kind: input, shape index: {}]
  %s1 = inlined_call_operand.vmem [shape: f32[3,64,128], index: 1, kind: input, shape index: {}]
  %s2 = inlined_call_operand.vmem [shape: f32[1,128], index: 2, kind: input, shape index: {}]
  %s3 = inlined_call_operand.vmem [shape: f32[3,128,32], index: 3, kind: input, shape index: {}]
  %s4 = inlined_call_operand.vmem [shape: f32[1,32], index: 4, kind: input, shape index: {}]
  %s5 = inlined_call_operand.vmem [shape: f32[32,128], index: 5, kind: input, shape index: {}]
  %s6 = inlined_call_operand.vmem [shape: f32[1,128], index: 6, kind: input, shape index: {}]
  %s7 = inlined_call_operand.vmem [shape: f32[128,256], index: 7, kind: input, shape index: {}]
  %s8 = inlined_call_operand.vmem [shape: f32[1,256], index: 8, kind: input, shape index: {}]
  %s9 = inlined_call_operand.vmem [shape: f32[1,8,256], index: 9, kind: output, shape index: {}]
  %s10 = sld [smem:[#allocation0]]
  $region46: #{convolutional_ae_forward.1} parent=0
    _
  %s12 = ssub.s32 1, %s10
  %s13 = scalar_select 0, %s12, %s10
  // Predicated region
  $region2: #{convolutional_ae_forward.1} parent=0 // pred_check
    _
  $region3: #{convolutional_ae_forward.1} parent=0 // pred_check_branch
    %15 = sbr.rel (0) target = $region5
  $region4: #{convolutional_ae_forward.1} parent=0 // pred_region
    _
  $region5: #{convolutional_ae_forward.1} parent=0 // pred_fallthru
    _
  // Predicated region
  $region6: #{convolutional_ae_forward.1} parent=0 // pred_check
    _
  $region7: #{convolutional_ae_forward.1} parent=0 // pred_check_branch
    %17 = sbr.rel (0) target = $region9
  $region8: #{convolutional_ae_forward.1} parent=0 // pred_region
    _
  $region9: #{convolutional_ae_forward.1} parent=0 // pred_fallthru
    _
  // Predicated region
  $region10: #{convolutional_ae_forward.1} parent=0 // pred_check
    _
  $region11: #{convolutional_ae_forward.1} parent=0 // pred_check_branch
    %19 = sbr.rel (0) target = $region13
  $region12: #{convolutional_ae_forward.1} parent=0 // pred_region
    _
  $region13: #{convolutional_ae_forward.1} parent=0 // pred_fallthru
    _
  // Predicated region
  $region14: #{convolutional_ae_forward.1} parent=0 // pred_check
    _
  $region15: #{convolutional_ae_forward.1} parent=0 // pred_check_branch
    %21 = sbr.rel (0) target = $region17
  $region16: #{convolutional_ae_forward.1} parent=0 // pred_region
    _
  $region17: #{convolutional_ae_forward.1} parent=0 // pred_fallthru
    _
  // Predicated region
  $region18: #{convolutional_ae_forward.1} parent=0 // pred_check
    _
  $region19: #{convolutional_ae_forward.1} parent=0 // pred_check_branch
    %23 = sbr.rel (0) target = $region21
  $region20: #{convolutional_ae_forward.1} parent=0 // pred_region
    _
  $region21: #{convolutional_ae_forward.1} parent=0 // pred_fallthru
    _
  // Predicated region
  $region22: #{convolutional_ae_forward.1} parent=0 // pred_check
    _
  $region23: #{convolutional_ae_forward.1} parent=0 // pred_check_branch
    %25 = sbr.rel (0) target = $region25
  $region24: #{convolutional_ae_forward.1} parent=0 // pred_region
    _
  $region25: #{convolutional_ae_forward.1} parent=0 // pred_fallthru
    _
  // Predicated region
  $region26: #{convolutional_ae_forward.1} parent=0 // pred_check
    _
  $region27: #{convolutional_ae_forward.1} parent=0 // pred_check_branch
    %27 = sbr.rel (0) target = $region29
  $region28: #{convolutional_ae_forward.1} parent=0 // pred_region
    _
  $region29: #{convolutional_ae_forward.1} parent=0 // pred_fallthru
    _
  // Predicated region
  $region30: #{convolutional_ae_forward.1} parent=0 // pred_check
    _
  $region31: #{convolutional_ae_forward.1} parent=0 // pred_check_branch
    %29 = sbr.rel (0) target = $region33
  $region32: #{convolutional_ae_forward.1} parent=0 // pred_region
    _
  $region33: #{convolutional_ae_forward.1} parent=0 // pred_fallthru
    _
  // Predicated region
  $region34: #{convolutional_ae_forward.1} parent=0 // pred_check
    _
  $region35: #{convolutional_ae_forward.1} parent=0 // pred_check_branch
    %31 = sbr.rel (0) target = $region37
  $region36: #{convolutional_ae_forward.1} parent=0 // pred_region
    _
  $region37: #{convolutional_ae_forward.1} parent=0 // pred_fallthru
    _
  %v32 = vld [vmem:[%s0] sm:$0xff]
  %v33 = vld [vmem:[%s0 + $0x8] sm:$0xff]
  %v34 = vld [vmem:[%s0 + $0x10] sm:$0xff]
  %v35 = vld [vmem:[%s0 + $0x18] sm:$0xff]
  %vm36 = vcmask 516096
  %37 = vst.msk [vmem:[#allocation2] sm:$0x1] %vm36, 0.0
  %38 = vst.msk [vmem:[#allocation2 + $0x21] sm:$0x1] %vm36, 0.0
  %vm39 = vcmask 523264
  %40 = vst.msk [vmem:[#allocation2 + $0x1] sm:$0xff] %vm39, %v32
  %41 = vst.msk [vmem:[#allocation2 + $0x9] sm:$0xff] %vm39, %v33
  %42 = vst.msk [vmem:[#allocation2 + $0x11] sm:$0xff] %vm39, %v34
  %43 = vst.msk [vmem:[#allocation2 + $0x19] sm:$0xff] %vm39, %v35
  %v44 = vld [vmem:[#allocation2] sm:$0xff]
  %v45 = vld [vmem:[#allocation2 + $0x8] sm:$0xff]
  %v46 = vld [vmem:[#allocation2 + $0x10] sm:$0xff]
  %v47 = vld [vmem:[#allocation2 + $0x18] sm:$0xff]
  %v48 = vld [vmem:[#allocation2 + $0x2] sm:$0xff]
  %v49 = vld [vmem:[#allocation2 + $0xa] sm:$0xff]
  %v50 = vld [vmem:[#allocation2 + $0x12] sm:$0xff]
  %v51 = vld [vmem:[#allocation2 + $0x1a] sm:$0xff]
  %v52 = vlaneseq
  %v53 = vshrl.u32 %v52, 7
  %v54 = vadd.s32 %v53, 8
  %v55 = vadd.s32 %v53, 16
  %v56 = vadd.s32 %v53, 24
  %vm57 = vcmp.lt.s32.totalorder %v53, 0
  %v58 = vsub.s32 0, %v53
  %v59 = vsel %vm57, %v58, %v53
  %v60 = vshrl.u32 %v59, 4
  %v61 = vand.u32 %v59, 15
  %v62 = vsub.s32 0, %v61
  %v63 = vsel %vm57, %v62, %v61
  %vm64 = vcmp.lt.s32.totalorder %v54, 0
  %v65 = vsub.s32 0, %v54
  %v66 = vsel %vm64, %v65, %v54
  %v67 = vshrl.u32 %v66, 4
  %v68 = vand.u32 %v66, 15
  %v69 = vsub.s32 0, %v68
  %v70 = vsel %vm64, %v69, %v68
  %vm71 = vcmp.lt.s32.totalorder %v55, 0
  %v72 = vsub.s32 0, %v55
  %v73 = vsel %vm71, %v72, %v55
  %v74 = vshrl.u32 %v73, 4
  %v75 = vand.u32 %v73, 15
  %v76 = vsub.s32 0, %v75
  %v77 = vsel %vm71, %v76, %v75
  %vm78 = vcmp.lt.s32.totalorder %v56, 0
  %v79 = vsub.s32 0, %v56
  %v80 = vsel %vm78, %v79, %v56
  %v81 = vshrl.u32 %v80, 4
  %v82 = vand.u32 %v80, 15
  %v83 = vsub.s32 0, %v82
  %v84 = vsel %vm78, %v83, %v82
  %vm85 = vcmp.ne.s32.totalorder %v63, 0
  %vm86 = vcmp.ne.s32.totalorder %v70, 0
  %vm87 = vcmp.ne.s32.totalorder %v77, 0
  %vm88 = vcmp.ne.s32.totalorder %v84, 0
  %vm89 = vcmp.lt.s32.totalorder %v63, 0
  %vm90 = vcmp.lt.s32.totalorder %v70, 0
  %vm91 = vcmp.lt.s32.totalorder %v77, 0
  %vm92 = vcmp.lt.s32.totalorder %v84, 0
  %vm93 = vmand %vm89, %vm85
  %vm94 = vmand %vm90, %vm86
  %vm95 = vmand %vm91, %vm87
  %vm96 = vmand %vm92, %vm88
  %v97 = vadd.s32 %v63, 16
  %v98 = vadd.s32 %v70, 16
  %v99 = vadd.s32 %v77, 16
  %v100 = vadd.s32 %v84, 16
  %v101 = vsel %vm93, %v97, %v63
  %v102 = vsel %vm94, %v98, %v70
  %v103 = vsel %vm95, %v99, %v77
  %v104 = vsel %vm96, %v100, %v84
  %s105 = scalar_lea.vmem %s1, 64
  %v106 = vld [vmem:[%s105] sm:$0xff]
  %v107 = vld [vmem:[%s105 + $0x8] sm:$0xff]
  %v108 = vld [vmem:[%s105 + $0x10] sm:$0xff]
  %v109 = vld [vmem:[%s105 + $0x18] sm:$0xff]
  %v110 = vld [vmem:[%s105 + $0x20] sm:$0xff]
  %v111 = vld [vmem:[%s105 + $0x28] sm:$0xff]
  %v112 = vld [vmem:[%s105 + $0x30] sm:$0xff]
  %v113 = vld [vmem:[%s105 + $0x38] sm:$0xff]
  %vm114 = vcmp.ne.s32.totalorder %v101, 0
  %vm115 = vcmp.ne.s32.totalorder %v102, 0
  %vm116 = vcmp.ne.s32.totalorder %v103, 0
  %vm117 = vcmp.ne.s32.totalorder %v104, 0
  %v118 = vld [vmem:[%s1] sm:$0xff]
  %v119 = vld [vmem:[%s1 + $0x8] sm:$0xff]
  %v120 = vld [vmem:[%s1 + $0x10] sm:$0xff]
  %v121 = vld [vmem:[%s1 + $0x18] sm:$0xff]
  %v122 = vld [vmem:[%s1 + $0x20] sm:$0xff]
  %v123 = vld [vmem:[%s1 + $0x28] sm:$0xff]
  %v124 = vld [vmem:[%s1 + $0x30] sm:$0xff]
  %v125 = vld [vmem:[%s1 + $0x38] sm:$0xff]
  %v127 = vsel %vm39, %v44, 0
  %v130 = vsel %vm39, %v45, 0
  %v133 = vsel %vm39, %v46, 0
  %v136 = vsel %vm39, %v47, 0
  %138 = vmatprep.subr.mxu0 0.0
  %139 = vmatpush1.msra.mxu0 %v118
  %140 = vmatprep.subr.mxu0 0.0
  %141 = vmatpush1.msra.mxu0 %v119
  %142 = vmatprep.subr.mxu0 0.0
  %143 = vmatpush1.msra.mxu0 %v120
  %144 = vmatprep.subr.mxu0 0.0
  %145 = vmatpush1.msra.mxu0 %v121
  %146 = vmatprep.subr.mxu0 0.0
  %147 = vmatpush1.msra.mxu0 %v122
  %148 = vmatprep.subr.mxu0 0.0
  %149 = vmatpush1.msra.mxu0 %v123
  %150 = vmatprep.subr.mxu0 0.0
  %151 = vmatpush1.msra.mxu0 %v124
  %152 = vmatprep.subr.mxu0 0.0
  %153 = vmatpush1.msra.mxu0 %v125
  %154 = vmatprep.subr.mxu0 0.0
  %155 = vmatpush1.msra.mxu0 0.0
  %156 = vmatprep.subr.mxu0 0.0
  %157 = vmatpush1.msra.mxu0 0.0
  %158 = vmatprep.subr.mxu0 0.0
  %159 = vmatpush1.msra.mxu0 0.0
  %160 = vmatprep.subr.mxu0 0.0
  %161 = vmatpush1.msra.mxu0 0.0
  %162 = vmatprep.subr.mxu0 0.0
  %163 = vmatpush1.msra.mxu0 0.0
  %164 = vmatprep.subr.mxu0 0.0
  %165 = vmatpush1.msra.mxu0 0.0
  %166 = vmatprep.subr.mxu0 0.0
  %167 = vmatpush1.msra.mxu0 0.0
  %168 = vmatprep.subr.mxu0 0.0
  %169 = vmatpush1.msra.mxu0 0.0
  %170 = vmatprep.subr.mxu0 0.0
  %171 = vmatpush1.msra.mxu0 0.0
  %172 = vmatprep.subr.mxu0 0.0
  %173 = vmatpush1.msra.mxu0 0.0
  %174 = vmatprep.subr.mxu0 0.0
  %175 = vmatpush1.msra.mxu0 0.0
  %176 = vmatprep.subr.mxu0 0.0
  %177 = vmatpush1.msra.mxu0 0.0
  %178 = vmatprep.subr.mxu0 0.0
  %179 = vmatpush1.msra.mxu0 0.0
  %180 = vmatprep.subr.mxu0 0.0
  %181 = vmatpush1.msra.mxu0 0.0
  %182 = vmatprep.subr.mxu0 0.0
  %183 = vmatpush1.msra.mxu0 0.0
  %184 = vmatprep.subr.mxu0 0.0
  %185 = vmatpush1.msra.mxu0 0.0
  %186 = vmatprep.subr.mxu0 0.0
  %187 = vmatpush1.msra.mxu0 0.0
  %188 = vmatprep.subr.mxu0 0.0
  %189 = vmatpush1.msra.mxu0 0.0
  %190 = vmatprep.subr.mxu0 0.0
  %191 = vmatpush1.msra.mxu0 0.0
  %192 = vmatprep.subr.mxu0 0.0
  %193 = vmatpush1.msra.mxu0 0.0
  %194 = vmatprep.subr.mxu0 0.0
  %195 = vmatpush1.msra.mxu0 0.0
  %196 = vmatprep.subr.mxu0 0.0
  %197 = vmatpush1.msra.mxu0 0.0
  %198 = vmatprep.subr.mxu0 0.0
  %199 = vmatpush1.msra.mxu0 0.0
  %200 = vmatprep.subr.mxu0 0.0
  %201 = vmatpush1.msra.mxu0 0.0
  %202 = vmatprep.mubr.f32.mxu0 0.0
  %203 = vmatmul.mubr.f32.gmra.mrb[0].mxu0 %v127
  %v204 = vpop.f32.mrb[0].mxu0
  %v205 = vadd.f32 0.0, %v204
  %v206 = vpop.f32.mrb[0].mxu0
  %207 = vmatprep.mubr.f32.mxu0 0.0
  %208 = vmatmul.mubr.f32.gmra.mrb[0].mxu0 %v130
  %v209 = vpop.f32.mrb[0].mxu0
  %v210 = vadd.f32 0.0, %v209
  %v211 = vpop.f32.mrb[0].mxu0
  %212 = vmatprep.mubr.f32.mxu0 0.0
  %213 = vmatmul.mubr.f32.gmra.mrb[0].mxu0 %v133
  %v214 = vpop.f32.mrb[0].mxu0
  %v215 = vadd.f32 0.0, %v214
  %v216 = vpop.f32.mrb[0].mxu0
  %217 = vmatprep.mubr.f32.mxu0 0.0
  %218 = vmatmul.mubr.f32.gmra.mrb[0].mxu0 %v136
  %v219 = vpop.f32.mrb[0].mxu0
  %v220 = vadd.f32 0.0, %v219
  %v221 = vpop.f32.mrb[0].mxu0
  %222 = vdwg.mxu0
  %v223 = vsel %vm114, %v205, 0.0
  %v224 = vsel %vm115, %v210, 0.0
  %v225 = vsel %vm116, %v215, 0.0
  %v226 = vsel %vm117, %v220, 0.0
  %v228 = vsel %vm39, %v32, 0
  %v231 = vsel %vm39, %v33, 0
  %v234 = vsel %vm39, %v34, 0
  %v237 = vsel %vm39, %v35, 0
  %239 = vmatprep.subr.mxu0 0.0
  %240 = vmatpush1.msra.mxu0 %v106
  %241 = vmatprep.subr.mxu0 0.0
  %242 = vmatpush1.msra.mxu0 %v107
  %243 = vmatprep.subr.mxu0 0.0
  %244 = vmatpush1.msra.mxu0 %v108
  %245 = vmatprep.subr.mxu0 0.0
  %246 = vmatpush1.msra.mxu0 %v109
  %247 = vmatprep.subr.mxu0 0.0
  %248 = vmatpush1.msra.mxu0 %v110
  %249 = vmatprep.subr.mxu0 0.0
  %250 = vmatpush1.msra.mxu0 %v111
  %251 = vmatprep.subr.mxu0 0.0
  %252 = vmatpush1.msra.mxu0 %v112
  %253 = vmatprep.subr.mxu0 0.0
  %254 = vmatpush1.msra.mxu0 %v113
  %255 = vmatprep.subr.mxu0 0.0
  %256 = vmatpush1.msra.mxu0 0.0
  %257 = vmatprep.subr.mxu0 0.0
  %258 = vmatpush1.msra.mxu0 0.0
  %259 = vmatprep.subr.mxu0 0.0
  %260 = vmatpush1.msra.mxu0 0.0
  %261 = vmatprep.subr.mxu0 0.0
  %262 = vmatpush1.msra.mxu0 0.0
  %263 = vmatprep.subr.mxu0 0.0
  %264 = vmatpush1.msra.mxu0 0.0
  %265 = vmatprep.subr.mxu0 0.0
  %266 = vmatpush1.msra.mxu0 0.0
  %267 = vmatprep.subr.mxu0 0.0
  %268 = vmatpush1.msra.mxu0 0.0
  %269 = vmatprep.subr.mxu0 0.0
  %270 = vmatpush1.msra.mxu0 0.0
  %271 = vmatprep.subr.mxu0 0.0
  %272 = vmatpush1.msra.mxu0 0.0
  %273 = vmatprep.subr.mxu0 0.0
  %274 = vmatpush1.msra.mxu0 0.0
  %275 = vmatprep.subr.mxu0 0.0
  %276 = vmatpush1.msra.mxu0 0.0
  %277 = vmatprep.subr.mxu0 0.0
  %278 = vmatpush1.msra.mxu0 0.0
  %279 = vmatprep.subr.mxu0 0.0
  %280 = vmatpush1.msra.mxu0 0.0
  %281 = vmatprep.subr.mxu0 0.0
  %282 = vmatpush1.msra.mxu0 0.0
  %283 = vmatprep.subr.mxu0 0.0
  %284 = vmatpush1.msra.mxu0 0.0
  %285 = vmatprep.subr.mxu0 0.0
  %286 = vmatpush1.msra.mxu0 0.0
  %287 = vmatprep.subr.mxu0 0.0
  %288 = vmatpush1.msra.mxu0 0.0
  %289 = vmatprep.subr.mxu0 0.0
  %290 = vmatpush1.msra.mxu0 0.0
  %291 = vmatprep.subr.mxu0 0.0
  %292 = vmatpush1.msra.mxu0 0.0
  %293 = vmatprep.subr.mxu0 0.0
  %294 = vmatpush1.msra.mxu0 0.0
  %295 = vmatprep.subr.mxu0 0.0
  %296 = vmatpush1.msra.mxu0 0.0
  %297 = vmatprep.subr.mxu0 0.0
  %298 = vmatpush1.msra.mxu0 0.0
  %299 = vmatprep.subr.mxu0 0.0
  %300 = vmatpush1.msra.mxu0 0.0
  %301 = vmatprep.subr.mxu0 0.0
  %302 = vmatpush1.msra.mxu0 0.0
  %303 = vmatprep.mubr.f32.mxu0 0.0
  %304 = vmatmul.mubr.f32.gmra.mrb[0].mxu0 %v228
  %v305 = vpop.f32.mrb[0].mxu0
  %v306 = vadd.f32 %v223, %v305
  %v307 = vpop.f32.mrb[0].mxu0
  %308 = vmatprep.mubr.f32.mxu0 0.0
  %309 = vmatmul.mubr.f32.gmra.mrb[0].mxu0 %v231
  %v310 = vpop.f32.mrb[0].mxu0
  %v311 = vadd.f32 %v224, %v310
  %v312 = vpop.f32.mrb[0].mxu0
  %313 = vmatprep.mubr.f32.mxu0 0.0
  %314 = vmatmul.mubr.f32.gmra.mrb[0].mxu0 %v234
  %v315 = vpop.f32.mrb[0].mxu0
  %v316 = vadd.f32 %v225, %v315
  %v317 = vpop.f32.mrb[0].mxu0
  %318 = vmatprep.mubr.f32.mxu0 0.0
  %319 = vmatmul.mubr.f32.gmra.mrb[0].mxu0 %v237
  %v320 = vpop.f32.mrb[0].mxu0
  %v321 = vadd.f32 %v226, %v320
  %v322 = vpop.f32.mrb[0].mxu0
  %323 = vdwg.mxu0
  %vm324 = vcmp.ne.s32.totalorder %v101, 15
  %vm325 = vcmp.ne.s32.totalorder %v102, 15
  %vm326 = vcmp.ne.s32.totalorder %v103, 15
  %vm327 = vcmp.ne.s32.totalorder %v104, 15
  %s328 = scalar_lea.vmem %s1, 128
  %v329 = vld [vmem:[%s328] sm:$0xff]
  %v330 = vld [vmem:[%s328 + $0x8] sm:$0xff]
  %v331 = vld [vmem:[%s328 + $0x10] sm:$0xff]
  %v332 = vld [vmem:[%s328 + $0x18] sm:$0xff]
  %v333 = vld [vmem:[%s328 + $0x20] sm:$0xff]
  %v334 = vld [vmem:[%s328 + $0x28] sm:$0xff]
  %v335 = vld [vmem:[%s328 + $0x30] sm:$0xff]
  %v336 = vld [vmem:[%s328 + $0x38] sm:$0xff]
  %v338 = vsel %vm39, %v48, 0
  %v341 = vsel %vm39, %v49, 0
  %v344 = vsel %vm39, %v50, 0
  %v347 = vsel %vm39, %v51, 0
  %349 = vmatprep.subr.mxu0 0.0
  %350 = vmatpush1.msra.mxu0 %v329
  %351 = vmatprep.subr.mxu0 0.0
  %352 = vmatpush1.msra.mxu0 %v330
  %353 = vmatprep.subr.mxu0 0.0
  %354 = vmatpush1.msra.mxu0 %v331
  %355 = vmatprep.subr.mxu0 0.0
  %356 = vmatpush1.msra.mxu0 %v332
  %357 = vmatprep.subr.mxu0 0.0
  %358 = vmatpush1.msra.mxu0 %v333
  %359 = vmatprep.subr.mxu0 0.0
  %360 = vmatpush1.msra.mxu0 %v334
  %361 = vmatprep.subr.mxu0 0.0
  %362 = vmatpush1.msra.mxu0 %v335
  %363 = vmatprep.subr.mxu0 0.0
  %364 = vmatpush1.msra.mxu0 %v336
  %365 = vmatprep.subr.mxu0 0.0
  %366 = vmatpush1.msra.mxu0 0.0
  %367 = vmatprep.subr.mxu0 0.0
  %368 = vmatpush1.msra.mxu0 0.0
  %369 = vmatprep.subr.mxu0 0.0
  %370 = vmatpush1.msra.mxu0 0.0
  %371 = vmatprep.subr.mxu0 0.0
  %372 = vmatpush1.msra.mxu0 0.0
  %373 = vmatprep.subr.mxu0 0.0
  %374 = vmatpush1.msra.mxu0 0.0
  %375 = vmatprep.subr.mxu0 0.0
  %376 = vmatpush1.msra.mxu0 0.0
  %377 = vmatprep.subr.mxu0 0.0
  %378 = vmatpush1.msra.mxu0 0.0
  %379 = vmatprep.subr.mxu0 0.0
  %380 = vmatpush1.msra.mxu0 0.0
  %381 = vmatprep.subr.mxu0 0.0
  %382 = vmatpush1.msra.mxu0 0.0
  %383 = vmatprep.subr.mxu0 0.0
  %384 = vmatpush1.msra.mxu0 0.0
  %385 = vmatprep.subr.mxu0 0.0
  %386 = vmatpush1.msra.mxu0 0.0
  %387 = vmatprep.subr.mxu0 0.0
  %388 = vmatpush1.msra.mxu0 0.0
  %389 = vmatprep.subr.mxu0 0.0
  %390 = vmatpush1.msra.mxu0 0.0
  %391 = vmatprep.subr.mxu0 0.0
  %392 = vmatpush1.msra.mxu0 0.0
  %393 = vmatprep.subr.mxu0 0.0
  %394 = vmatpush1.msra.mxu0 0.0
  %395 = vmatprep.subr.mxu0 0.0
  %396 = vmatpush1.msra.mxu0 0.0
  %397 = vmatprep.subr.mxu0 0.0
  %398 = vmatpush1.msra.mxu0 0.0
  %399 = vmatprep.subr.mxu0 0.0
  %400 = vmatpush1.msra.mxu0 0.0
  %401 = vmatprep.subr.mxu0 0.0
  %402 = vmatpush1.msra.mxu0 0.0
  %403 = vmatprep.subr.mxu0 0.0
  %404 = vmatpush1.msra.mxu0 0.0
  %405 = vmatprep.subr.mxu0 0.0
  %406 = vmatpush1.msra.mxu0 0.0
  %407 = vmatprep.subr.mxu0 0.0
  %408 = vmatpush1.msra.mxu0 0.0
  %409 = vmatprep.subr.mxu0 0.0
  %410 = vmatpush1.msra.mxu0 0.0
  %411 = vmatprep.subr.mxu0 0.0
  %412 = vmatpush1.msra.mxu0 0.0
  %413 = vmatprep.mubr.f32.mxu0 0.0
  %414 = vmatmul.mubr.f32.gmra.mrb[0].mxu0 %v338
  %v415 = vpop.f32.mrb[0].mxu0
  %v416 = vadd.f32 0.0, %v415
  %v417 = vpop.f32.mrb[0].mxu0
  %418 = vmatprep.mubr.f32.mxu0 0.0
  %419 = vmatmul.mubr.f32.gmra.mrb[0].mxu0 %v341
  %v420 = vpop.f32.mrb[0].mxu0
  %v421 = vadd.f32 0.0, %v420
  %v422 = vpop.f32.mrb[0].mxu0
  %423 = vmatprep.mubr.f32.mxu0 0.0
  %424 = vmatmul.mubr.f32.gmra.mrb[0].mxu0 %v344
  %v425 = vpop.f32.mrb[0].mxu0
  %v426 = vadd.f32 0.0, %v425
  %v427 = vpop.f32.mrb[0].mxu0
  %428 = vmatprep.mubr.f32.mxu0 0.0
  %429 = vmatmul.mubr.f32.gmra.mrb[0].mxu0 %v347
  %v430 = vpop.f32.mrb[0].mxu0
  %v431 = vadd.f32 0.0, %v430
  %v432 = vpop.f32.mrb[0].mxu0
  %433 = vdwg.mxu0
  %v434 = vsel %vm324, %v416, 0.0
  %v435 = vsel %vm325, %v421, 0.0
  %v436 = vsel %vm326, %v426, 0.0
  %v437 = vsel %vm327, %v431, 0.0
  %v438 = vadd.f32 %v306, %v434
  %v439 = vadd.f32 %v311, %v435
  %v440 = vadd.f32 %v316, %v436
  %v441 = vadd.f32 %v321, %v437
  %v442 = vld [vmem:[%s2] sm:$0x1]
  %v444 = vlaneseq
  %v445 = vshrl.u32 %v444, 7
  %v446 = vsub.s32 0, %v445
  %v447 = vrot.slane %v442, %v446
  %v449 = vadd.f32 %v438, %v447
  %v450 = vadd.f32 %v439, %v447
  %v451 = vadd.f32 %v440, %v447
  %v452 = vadd.f32 %v441, %v447
  %v453 = vmax.f32 %v449, 0.0
  %v454 = vmax.f32 %v450, 0.0
  %v455 = vmax.f32 %v451, 0.0
  %v456 = vmax.f32 %v452, 0.0
  %457 = vst [vmem:[#allocation3] sm:$0xff] %v453
  %458 = vst [vmem:[#allocation3 + $0x8] sm:$0xff] %v454
  %459 = vst [vmem:[#allocation3 + $0x10] sm:$0xff] %v455
  %460 = vst [vmem:[#allocation3 + $0x18] sm:$0xff] %v456
  %v461 = vld [vmem:[#allocation3] ss:$2 sm:$0xff]
  %s462 = scalar_lea.vmem [#allocation3], 16
  %v463 = vld [vmem:[%s462] ss:$2 sm:$0xff]
  %s464 = scalar_lea.vmem [#allocation3], 1
  %v465 = vld [vmem:[%s464] ss:$2 sm:$0xff]
  %s466 = scalar_lea.vmem [#allocation3], 17
  %v467 = vld [vmem:[%s466] ss:$2 sm:$0xff]
  %v468 = vmax.f32 %v461, %v465
  %v469 = vmax.f32 %v463, %v467
  %472 = vrot.lane.b32.xlu0 %v468, 120
  %v473 = vpop.permute.xlu0 %472
  %474 = vrot.lane.b32.xlu0 %v469, 120
  %v475 = vpop.permute.xlu0 %474
  %v478 = vmax.f32 %v468, %v473
  %v479 = vmax.f32 %v469, %v475
  %480 = vst [vmem:[#allocation4] sm:$0x1] 0.0
  %481 = vst [vmem:[#allocation4 + $0x11] sm:$0x1] 0.0
  %482 = vst [vmem:[#allocation4 + $0x1] sm:$0xff] %v478
  %483 = vst [vmem:[#allocation4 + $0x9] sm:$0xff] %v479
  %v484 = vld [vmem:[#allocation4] sm:$0xff]
  %v485 = vld [vmem:[#allocation4 + $0x8] sm:$0xff]
  %v486 = vld [vmem:[#allocation4 + $0x2] sm:$0xff]
  %v487 = vld [vmem:[#allocation4 + $0xa] sm:$0xff]
  %vm488 = vcmp.lt.s32.totalorder %v53, 0
  %v489 = vsub.s32 0, %v53
  %v490 = vsel %vm488, %v489, %v53
  %v491 = vshrl.u32 %v490, 3
  %v492 = vand.u32 %v490, 7
  %v493 = vsub.s32 0, %v492
  %v494 = vsel %vm488, %v493, %v492
  %vm495 = vcmp.lt.s32.totalorder %v54, 0
  %v496 = vsub.s32 0, %v54
  %v497 = vsel %vm495, %v496, %v54
  %v498 = vshrl.u32 %v497, 3
  %v499 = vand.u32 %v497, 7
  %v500 = vsub.s32 0, %v499
  %v501 = vsel %vm495, %v500, %v499
  %vm502 = vcmp.ne.s32.totalorder %v494, 0
  %vm503 = vcmp.ne.s32.totalorder %v501, 0
  %vm504 = vcmp.lt.s32.totalorder %v494, 0
  %vm505 = vcmp.lt.s32.totalorder %v501, 0
  %vm506 = vmand %vm504, %vm502
  %vm507 = vmand %vm505, %vm503
  %v508 = vadd.s32 %v494, 8
  %v509 = vadd.s32 %v501, 8
  %v510 = vsel %vm506, %v508, %v494
  %v511 = vsel %vm507, %v509, %v501
  %s512 = scalar_lea.vmem %s3, 128
  %v513 = vld [vmem:[%s512] sm:$0xff]
  %v514 = vld [vmem:[%s512 + $0x8] sm:$0xff]
  %v515 = vld [vmem:[%s512 + $0x10] sm:$0xff]
  %v516 = vld [vmem:[%s512 + $0x18] sm:$0xff]
  %v517 = vld [vmem:[%s512 + $0x20] sm:$0xff]
  %v518 = vld [vmem:[%s512 + $0x28] sm:$0xff]
  %v519 = vld [vmem:[%s512 + $0x30] sm:$0xff]
  %v520 = vld [vmem:[%s512 + $0x38] sm:$0xff]
  %v521 = vld [vmem:[%s512 + $0x40] sm:$0xff]
  %v522 = vld [vmem:[%s512 + $0x48] sm:$0xff]
  %v523 = vld [vmem:[%s512 + $0x50] sm:$0xff]
  %v524 = vld [vmem:[%s512 + $0x58] sm:$0xff]
  %v525 = vld [vmem:[%s512 + $0x60] sm:$0xff]
  %v526 = vld [vmem:[%s512 + $0x68] sm:$0xff]
  %v527 = vld [vmem:[%s512 + $0x70] sm:$0xff]
  %v528 = vld [vmem:[%s512 + $0x78] sm:$0xff]
  %vm529 = vcmp.ne.s32.totalorder %v510, 0
  %vm530 = vcmp.ne.s32.totalorder %v511, 0
  %v531 = vld [vmem:[%s3] sm:$0xff]
  %v532 = vld [vmem:[%s3 + $0x8] sm:$0xff]
  %v533 = vld [vmem:[%s3 + $0x10] sm:$0xff]
  %v534 = vld [vmem:[%s3 + $0x18] sm:$0xff]
  %v535 = vld [vmem:[%s3 + $0x20] sm:$0xff]
  %v536 = vld [vmem:[%s3 + $0x28] sm:$0xff]
  %v537 = vld [vmem:[%s3 + $0x30] sm:$0xff]
  %v538 = vld [vmem:[%s3 + $0x38] sm:$0xff]
  %v539 = vld [vmem:[%s3 + $0x40] sm:$0xff]
  %v540 = vld [vmem:[%s3 + $0x48] sm:$0xff]
  %v541 = vld [vmem:[%s3 + $0x50] sm:$0xff]
  %v542 = vld [vmem:[%s3 + $0x58] sm:$0xff]
  %v543 = vld [vmem:[%s3 + $0x60] sm:$0xff]
  %v544 = vld [vmem:[%s3 + $0x68] sm:$0xff]
  %v545 = vld [vmem:[%s3 + $0x70] sm:$0xff]
  %v546 = vld [vmem:[%s3 + $0x78] sm:$0xff]
  %547 = vmatprep.subr.mxu0 0.0
  %548 = vmatpush1.msra.mxu0 %v531
  %549 = vmatprep.subr.mxu0 0.0
  %550 = vmatpush1.msra.mxu0 %v532
  %551 = vmatprep.subr.mxu0 0.0
  %552 = vmatpush1.msra.mxu0 %v533
  %553 = vmatprep.subr.mxu0 0.0
  %554 = vmatpush1.msra.mxu0 %v534
  %555 = vmatprep.subr.mxu0 0.0
  %556 = vmatpush1.msra.mxu0 %v535
  %557 = vmatprep.subr.mxu0 0.0
  %558 = vmatpush1.msra.mxu0 %v536
  %559 = vmatprep.subr.mxu0 0.0
  %560 = vmatpush1.msra.mxu0 %v537
  %561 = vmatprep.subr.mxu0 0.0
  %562 = vmatpush1.msra.mxu0 %v538
  %563 = vmatprep.subr.mxu0 0.0
  %564 = vmatpush1.msra.mxu0 %v539
  %565 = vmatprep.subr.mxu0 0.0
  %566 = vmatpush1.msra.mxu0 %v540
  %567 = vmatprep.subr.mxu0 0.0
  %568 = vmatpush1.msra.mxu0 %v541
  %569 = vmatprep.subr.mxu0 0.0
  %570 = vmatpush1.msra.mxu0 %v542
  %571 = vmatprep.subr.mxu0 0.0
  %572 = vmatpush1.msra.mxu0 %v543
  %573 = vmatprep.subr.mxu0 0.0
  %574 = vmatpush1.msra.mxu0 %v544
  %575 = vmatprep.subr.mxu0 0.0
  %576 = vmatpush1.msra.mxu0 %v545
  %577 = vmatprep.subr.mxu0 0.0
  %578 = vmatpush1.msra.mxu0 %v546
  %579 = vmatprep.subr.mxu0 0.0
  %580 = vmatpush1.msra.mxu0 0.0
  %581 = vmatprep.subr.mxu0 0.0
  %582 = vmatpush1.msra.mxu0 0.0
  %583 = vmatprep.subr.mxu0 0.0
  %584 = vmatpush1.msra.mxu0 0.0
  %585 = vmatprep.subr.mxu0 0.0
  %586 = vmatpush1.msra.mxu0 0.0
  %587 = vmatprep.subr.mxu0 0.0
  %588 = vmatpush1.msra.mxu0 0.0
  %589 = vmatprep.subr.mxu0 0.0
  %590 = vmatpush1.msra.mxu0 0.0
  %591 = vmatprep.subr.mxu0 0.0
  %592 = vmatpush1.msra.mxu0 0.0
  %593 = vmatprep.subr.mxu0 0.0
  %594 = vmatpush1.msra.mxu0 0.0
  %595 = vmatprep.subr.mxu0 0.0
  %596 = vmatpush1.msra.mxu0 0.0
  %597 = vmatprep.subr.mxu0 0.0
  %598 = vmatpush1.msra.mxu0 0.0
  %599 = vmatprep.subr.mxu0 0.0
  %600 = vmatpush1.msra.mxu0 0.0
  %601 = vmatprep.subr.mxu0 0.0
  %602 = vmatpush1.msra.mxu0 0.0
  %603 = vmatprep.subr.mxu0 0.0
  %604 = vmatpush1.msra.mxu0 0.0
  %605 = vmatprep.subr.mxu0 0.0
  %606 = vmatpush1.msra.mxu0 0.0
  %607 = vmatprep.subr.mxu0 0.0
  %608 = vmatpush1.msra.mxu0 0.0
  %609 = vmatprep.subr.mxu0 0.0
  %610 = vmatpush1.msra.mxu0 0.0
  %611 = vmatprep.mubr.f32.mxu0 0.0
  %612 = vmatmul.mubr.f32.gmra.mrb[0].mxu0 %v484
  %v613 = vpop.f32.mrb[0].mxu0
  %v614 = vadd.f32 0.0, %v613
  %v615 = vpop.f32.mrb[0].mxu0
  %616 = vmatprep.mubr.f32.mxu0 0.0
  %617 = vmatmul.mubr.f32.gmra.mrb[0].mxu0 %v485
  %v618 = vpop.f32.mrb[0].mxu0
  %v619 = vadd.f32 0.0, %v618
  %v620 = vpop.f32.mrb[0].mxu0
  %621 = vdwg.mxu0
  %v622 = vsel %vm529, %v614, 0.0
  %v623 = vsel %vm530, %v619, 0.0
  %624 = vmatprep.subr.mxu0 0.0
  %625 = vmatpush1.msra.mxu0 %v513
  %626 = vmatprep.subr.mxu0 0.0
  %627 = vmatpush1.msra.mxu0 %v514
  %628 = vmatprep.subr.mxu0 0.0
  %629 = vmatpush1.msra.mxu0 %v515
  %630 = vmatprep.subr.mxu0 0.0
  %631 = vmatpush1.msra.mxu0 %v516
  %632 = vmatprep.subr.mxu0 0.0
  %633 = vmatpush1.msra.mxu0 %v517
  %634 = vmatprep.subr.mxu0 0.0
  %635 = vmatpush1.msra.mxu0 %v518
  %636 = vmatprep.subr.mxu0 0.0
  %637 = vmatpush1.msra.mxu0 %v519
  %638 = vmatprep.subr.mxu0 0.0
  %639 = vmatpush1.msra.mxu0 %v520
  %640 = vmatprep.subr.mxu0 0.0
  %641 = vmatpush1.msra.mxu0 %v521
  %642 = vmatprep.subr.mxu0 0.0
  %643 = vmatpush1.msra.mxu0 %v522
  %644 = vmatprep.subr.mxu0 0.0
  %645 = vmatpush1.msra.mxu0 %v523
  %646 = vmatprep.subr.mxu0 0.0
  %647 = vmatpush1.msra.mxu0 %v524
  %648 = vmatprep.subr.mxu0 0.0
  %649 = vmatpush1.msra.mxu0 %v525
  %650 = vmatprep.subr.mxu0 0.0
  %651 = vmatpush1.msra.mxu0 %v526
  %652 = vmatprep.subr.mxu0 0.0
  %653 = vmatpush1.msra.mxu0 %v527
  %654 = vmatprep.subr.mxu0 0.0
  %655 = vmatpush1.msra.mxu0 %v528
  %656 = vmatprep.subr.mxu0 0.0
  %657 = vmatpush1.msra.mxu0 0.0
  %658 = vmatprep.subr.mxu0 0.0
  %659 = vmatpush1.msra.mxu0 0.0
  %660 = vmatprep.subr.mxu0 0.0
  %661 = vmatpush1.msra.mxu0 0.0
  %662 = vmatprep.subr.mxu0 0.0
  %663 = vmatpush1.msra.mxu0 0.0
  %664 = vmatprep.subr.mxu0 0.0
  %665 = vmatpush1.msra.mxu0 0.0
  %666 = vmatprep.subr.mxu0 0.0
  %667 = vmatpush1.msra.mxu0 0.0
  %668 = vmatprep.subr.mxu0 0.0
  %669 = vmatpush1.msra.mxu0 0.0
  %670 = vmatprep.subr.mxu0 0.0
  %671 = vmatpush1.msra.mxu0 0.0
  %672 = vmatprep.subr.mxu0 0.0
  %673 = vmatpush1.msra.mxu0 0.0
  %674 = vmatprep.subr.mxu0 0.0
  %675 = vmatpush1.msra.mxu0 0.0
  %676 = vmatprep.subr.mxu0 0.0
  %677 = vmatpush1.msra.mxu0 0.0
  %678 = vmatprep.subr.mxu0 0.0
  %679 = vmatpush1.msra.mxu0 0.0
  %680 = vmatprep.subr.mxu0 0.0
  %681 = vmatpush1.msra.mxu0 0.0
  %682 = vmatprep.subr.mxu0 0.0
  %683 = vmatpush1.msra.mxu0 0.0
  %684 = vmatprep.subr.mxu0 0.0
  %685 = vmatpush1.msra.mxu0 0.0
  %686 = vmatprep.subr.mxu0 0.0
  %687 = vmatpush1.msra.mxu0 0.0
  %688 = vmatprep.mubr.f32.mxu0 0.0
  %689 = vmatmul.mubr.f32.gmra.mrb[0].mxu0 %v478
  %v690 = vpop.f32.mrb[0].mxu0
  %v691 = vadd.f32 %v622, %v690
  %v692 = vpop.f32.mrb[0].mxu0
  %693 = vmatprep.mubr.f32.mxu0 0.0
  %694 = vmatmul.mubr.f32.gmra.mrb[0].mxu0 %v479
  %v695 = vpop.f32.mrb[0].mxu0
  %v696 = vadd.f32 %v623, %v695
  %v697 = vpop.f32.mrb[0].mxu0
  %698 = vdwg.mxu0
  %vm699 = vcmp.ne.s32.totalorder %v510, 7
  %vm700 = vcmp.ne.s32.totalorder %v511, 7
  %s701 = scalar_lea.vmem %s3, 256
  %v702 = vld [vmem:[%s701] sm:$0xff]
  %v703 = vld [vmem:[%s701 + $0x8] sm:$0xff]
  %v704 = vld [vmem:[%s701 + $0x10] sm:$0xff]
  %v705 = vld [vmem:[%s701 + $0x18] sm:$0xff]
  %v706 = vld [vmem:[%s701 + $0x20] sm:$0xff]
  %v707 = vld [vmem:[%s701 + $0x28] sm:$0xff]
  %v708 = vld [vmem:[%s701 + $0x30] sm:$0xff]
  %v709 = vld [vmem:[%s701 + $0x38] sm:$0xff]
  %v710 = vld [vmem:[%s701 + $0x40] sm:$0xff]
  %v711 = vld [vmem:[%s701 + $0x48] sm:$0xff]
  %v712 = vld [vmem:[%s701 + $0x50] sm:$0xff]
  %v713 = vld [vmem:[%s701 + $0x58] sm:$0xff]
  %v714 = vld [vmem:[%s701 + $0x60] sm:$0xff]
  %v715 = vld [vmem:[%s701 + $0x68] sm:$0xff]
  %v716 = vld [vmem:[%s701 + $0x70] sm:$0xff]
  %v717 = vld [vmem:[%s701 + $0x78] sm:$0xff]
  %718 = vmatprep.subr.mxu0 0.0
  %719 = vmatpush1.msra.mxu0 %v702
  %720 = vmatprep.subr.mxu0 0.0
  %721 = vmatpush1.msra.mxu0 %v703
  %722 = vmatprep.subr.mxu0 0.0
  %723 = vmatpush1.msra.mxu0 %v704
  %724 = vmatprep.subr.mxu0 0.0
  %725 = vmatpush1.msra.mxu0 %v705
  %726 = vmatprep.subr.mxu0 0.0
  %727 = vmatpush1.msra.mxu0 %v706
  %728 = vmatprep.subr.mxu0 0.0
  %729 = vmatpush1.msra.mxu0 %v707
  %730 = vmatprep.subr.mxu0 0.0
  %731 = vmatpush1.msra.mxu0 %v708
  %732 = vmatprep.subr.mxu0 0.0
  %733 = vmatpush1.msra.mxu0 %v709
  %734 = vmatprep.subr.mxu0 0.0
  %735 = vmatpush1.msra.mxu0 %v710
  %736 = vmatprep.subr.mxu0 0.0
  %737 = vmatpush1.msra.mxu0 %v711
  %738 = vmatprep.subr.mxu0 0.0
  %739 = vmatpush1.msra.mxu0 %v712
  %740 = vmatprep.subr.mxu0 0.0
  %741 = vmatpush1.msra.mxu0 %v713
  %742 = vmatprep.subr.mxu0 0.0
  %743 = vmatpush1.msra.mxu0 %v714
  %744 = vmatprep.subr.mxu0 0.0
  %745 = vmatpush1.msra.mxu0 %v715
  %746 = vmatprep.subr.mxu0 0.0
  %747 = vmatpush1.msra.mxu0 %v716
  %748 = vmatprep.subr.mxu0 0.0
  %749 = vmatpush1.msra.mxu0 %v717
  %750 = vmatprep.subr.mxu0 0.0
  %751 = vmatpush1.msra.mxu0 0.0
  %752 = vmatprep.subr.mxu0 0.0
  %753 = vmatpush1.msra.mxu0 0.0
  %754 = vmatprep.subr.mxu0 0.0
  %755 = vmatpush1.msra.mxu0 0.0
  %756 = vmatprep.subr.mxu0 0.0
  %757 = vmatpush1.msra.mxu0 0.0
  %758 = vmatprep.subr.mxu0 0.0
  %759 = vmatpush1.msra.mxu0 0.0
  %760 = vmatprep.subr.mxu0 0.0
  %761 = vmatpush1.msra.mxu0 0.0
  %762 = vmatprep.subr.mxu0 0.0
  %763 = vmatpush1.msra.mxu0 0.0
  %764 = vmatprep.subr.mxu0 0.0
  %765 = vmatpush1.msra.mxu0 0.0
  %766 = vmatprep.subr.mxu0 0.0
  %767 = vmatpush1.msra.mxu0 0.0
  %768 = vmatprep.subr.mxu0 0.0
  %769 = vmatpush1.msra.mxu0 0.0
  %770 = vmatprep.subr.mxu0 0.0
  %771 = vmatpush1.msra.mxu0 0.0
  %772 = vmatprep.subr.mxu0 0.0
  %773 = vmatpush1.msra.mxu0 0.0
  %774 = vmatprep.subr.mxu0 0.0
  %775 = vmatpush1.msra.mxu0 0.0
  %776 = vmatprep.subr.mxu0 0.0
  %777 = vmatpush1.msra.mxu0 0.0
  %778 = vmatprep.subr.mxu0 0.0
  %779 = vmatpush1.msra.mxu0 0.0
  %780 = vmatprep.subr.mxu0 0.0
  %781 = vmatpush1.msra.mxu0 0.0
  %782 = vmatprep.mubr.f32.mxu0 0.0
  %783 = vmatmul.mubr.f32.gmra.mrb[0].mxu0 %v486
  %v784 = vpop.f32.mrb[0].mxu0
  %v785 = vadd.f32 0.0, %v784
  %v786 = vpop.f32.mrb[0].mxu0
  %787 = vmatprep.mubr.f32.mxu0 0.0
  %788 = vmatmul.mubr.f32.gmra.mrb[0].mxu0 %v487
  %v789 = vpop.f32.mrb[0].mxu0
  %v790 = vadd.f32 0.0, %v789
  %v791 = vpop.f32.mrb[0].mxu0
  %792 = vdwg.mxu0
  %v793 = vsel %vm699, %v785, 0.0
  %v794 = vsel %vm700, %v790, 0.0
  %v795 = vadd.f32 %v691, %v793
  %v796 = vadd.f32 %v696, %v794
  %v797 = vld [vmem:[%s4] sm:$0x1]
  %v799 = vlaneseq
  %v800 = vshrl.u32 %v799, 7
  %v801 = vsub.s32 0, %v800
  %v802 = vrot.slane %v797, %v801
  %v804 = vadd.f32 %v795, %v802
  %v805 = vadd.f32 %v796, %v802
  %v806 = vmax.f32 %v804, 0.0
  %v807 = vmax.f32 %v805, 0.0
  %vm808 = vcmask 261120
  %809 = vst.msk [vmem:[#allocation5] sm:$0xff] %vm808, %v806
  %810 = vst.msk [vmem:[#allocation5 + $0x8] sm:$0xff] %vm808, %v807
  %v811 = vld [vmem:[#allocation5] ss:$2 sm:$0xff]
  %s812 = scalar_lea.vmem [#allocation5], 1
  %v813 = vld [vmem:[%s812] ss:$2 sm:$0xff]
  %v814 = vmax.f32 %v811, %v813
  %816 = vrot.lane.b32.xlu0 %v814, 124
  %v817 = vpop.permute.xlu0 %816
  %819 = vrot.lane.b32.xlu0 %v814, 28
  %v820 = vpop.permute.xlu0 %819
  %vm822 = vcmask 228352
  %v823 = vsel %vm822, %v817, %v820
  %v824 = vmax.f32 %v814, %v823
  %v825 = vld [vmem:[%s5] sm:$0xff]
  %v826 = vld [vmem:[%s5 + $0x8] sm:$0xff]
  %v827 = vld [vmem:[%s5 + $0x10] sm:$0xff]
  %v828 = vld [vmem:[%s5 + $0x18] sm:$0xff]
  %v829 = vld [vmem:[%s6] sm:$0x1]
  %v831 = vlaneseq
  %v832 = vshrl.u32 %v831, 7
  %v833 = vsub.s32 0, %v832
  %v834 = vrot.slane %v829, %v833
  %v837 = vsel %vm808, %v824, 0
  %839 = vmatprep.subr.mxu0 0.0
  %840 = vmatpush1.msra.mxu0 %v825
  %841 = vmatprep.subr.mxu0 0.0
  %842 = vmatpush1.msra.mxu0 %v826
  %843 = vmatprep.subr.mxu0 0.0
  %844 = vmatpush1.msra.mxu0 %v827
  %845 = vmatprep.subr.mxu0 0.0
  %846 = vmatpush1.msra.mxu0 %v828
  %847 = vmatprep.subr.mxu0 0.0
  %848 = vmatpush1.msra.mxu0 0.0
  %849 = vmatprep.subr.mxu0 0.0
  %850 = vmatpush1.msra.mxu0 0.0
  %851 = vmatprep.subr.mxu0 0.0
  %852 = vmatpush1.msra.mxu0 0.0
  %853 = vmatprep.subr.mxu0 0.0
  %854 = vmatpush1.msra.mxu0 0.0
  %855 = vmatprep.subr.mxu0 0.0
  %856 = vmatpush1.msra.mxu0 0.0
  %857 = vmatprep.subr.mxu0 0.0
  %858 = vmatpush1.msra.mxu0 0.0
  %859 = vmatprep.subr.mxu0 0.0
  %860 = vmatpush1.msra.mxu0 0.0
  %861 = vmatprep.subr.mxu0 0.0
  %862 = vmatpush1.msra.mxu0 0.0
  %863 = vmatprep.subr.mxu0 0.0
  %864 = vmatpush1.msra.mxu0 0.0
  %865 = vmatprep.subr.mxu0 0.0
  %866 = vmatpush1.msra.mxu0 0.0
  %867 = vmatprep.subr.mxu0 0.0
  %868 = vmatpush1.msra.mxu0 0.0
  %869 = vmatprep.subr.mxu0 0.0
  %870 = vmatpush1.msra.mxu0 0.0
  %871 = vmatprep.subr.mxu0 0.0
  %872 = vmatpush1.msra.mxu0 0.0
  %873 = vmatprep.subr.mxu0 0.0
  %874 = vmatpush1.msra.mxu0 0.0
  %875 = vmatprep.subr.mxu0 0.0
  %876 = vmatpush1.msra.mxu0 0.0
  %877 = vmatprep.subr.mxu0 0.0
  %878 = vmatpush1.msra.mxu0 0.0
  %879 = vmatprep.subr.mxu0 0.0
  %880 = vmatpush1.msra.mxu0 0.0
  %881 = vmatprep.subr.mxu0 0.0
  %882 = vmatpush1.msra.mxu0 0.0
  %883 = vmatprep.subr.mxu0 0.0
  %884 = vmatpush1.msra.mxu0 0.0
  %885 = vmatprep.subr.mxu0 0.0
  %886 = vmatpush1.msra.mxu0 0.0
  %887 = vmatprep.subr.mxu0 0.0
  %888 = vmatpush1.msra.mxu0 0.0
  %889 = vmatprep.subr.mxu0 0.0
  %890 = vmatpush1.msra.mxu0 0.0
  %891 = vmatprep.subr.mxu0 0.0
  %892 = vmatpush1.msra.mxu0 0.0
  %893 = vmatprep.subr.mxu0 0.0
  %894 = vmatpush1.msra.mxu0 0.0
  %895 = vmatprep.subr.mxu0 0.0
  %896 = vmatpush1.msra.mxu0 0.0
  %897 = vmatprep.subr.mxu0 0.0
  %898 = vmatpush1.msra.mxu0 0.0
  %899 = vmatprep.subr.mxu0 0.0
  %900 = vmatpush1.msra.mxu0 0.0
  %901 = vmatprep.subr.mxu0 0.0
  %902 = vmatpush1.msra.mxu0 0.0
  %903 = vmatprep.mubr.f32.mxu0 0.0
  %904 = vmatmul.mubr.f32.gmra.mrb[0].mxu0 %v837
  %v905 = vpop.f32.mrb[0].mxu0
  %v906 = vadd.f32 %v834, %v905
  %v907 = vpop.f32.mrb[0].mxu0
  %908 = vdwg.mxu0
  %v909 = vmax.f32 %v906, 0.0
  %v910 = vld [vmem:[%s7] sm:$0xff]
  %v911 = vld [vmem:[%s7 + $0x8] sm:$0xff]
  %v912 = vld [vmem:[%s7 + $0x10] sm:$0xff]
  %v913 = vld [vmem:[%s7 + $0x18] sm:$0xff]
  %v914 = vld [vmem:[%s7 + $0x20] sm:$0xff]
  %v915 = vld [vmem:[%s7 + $0x28] sm:$0xff]
  %v916 = vld [vmem:[%s7 + $0x30] sm:$0xff]
  %v917 = vld [vmem:[%s7 + $0x38] sm:$0xff]
  %v918 = vld [vmem:[%s7 + $0x40] sm:$0xff]
  %v919 = vld [vmem:[%s7 + $0x48] sm:$0xff]
  %v920 = vld [vmem:[%s7 + $0x50] sm:$0xff]
  %v921 = vld [vmem:[%s7 + $0x58] sm:$0xff]
  %v922 = vld [vmem:[%s7 + $0x60] sm:$0xff]
  %v923 = vld [vmem:[%s7 + $0x68] sm:$0xff]
  %v924 = vld [vmem:[%s7 + $0x70] sm:$0xff]
  %v925 = vld [vmem:[%s7 + $0x78] sm:$0xff]
  %v926 = vld [vmem:[%s7 + $0x80] sm:$0xff]
  %v927 = vld [vmem:[%s7 + $0x88] sm:$0xff]
  %v928 = vld [vmem:[%s7 + $0x90] sm:$0xff]
  %v929 = vld [vmem:[%s7 + $0x98] sm:$0xff]
  %v930 = vld [vmem:[%s7 + $0xa0] sm:$0xff]
  %v931 = vld [vmem:[%s7 + $0xa8] sm:$0xff]
  %v932 = vld [vmem:[%s7 + $0xb0] sm:$0xff]
  %v933 = vld [vmem:[%s7 + $0xb8] sm:$0xff]
  %v934 = vld [vmem:[%s7 + $0xc0] sm:$0xff]
  %v935 = vld [vmem:[%s7 + $0xc8] sm:$0xff]
  %v936 = vld [vmem:[%s7 + $0xd0] sm:$0xff]
  %v937 = vld [vmem:[%s7 + $0xd8] sm:$0xff]
  %v938 = vld [vmem:[%s7 + $0xe0] sm:$0xff]
  %v939 = vld [vmem:[%s7 + $0xe8] sm:$0xff]
  %v940 = vld [vmem:[%s7 + $0xf0] sm:$0xff]
  %v941 = vld [vmem:[%s7 + $0xf8] sm:$0xff]
  %v942 = vld [vmem:[%s8] sm:$0x3]
  %v944 = vlaneseq
  %v945 = vshrl.u32 %v944, 7
  %v946 = vsub.s32 0, %v945
  %v947 = vrot.slane %v942, %v946
  %v948 = vlaneseq
  %v949 = vshrl.u32 %v948, 7
  %v950 = vsub.s32 1, %v949
  %v951 = vrot.slane %v942, %v950
  %954 = vmatprep.subr.mxu0 %v911
  %955 = vmatpush1.msra.mxu0 %v910
  %956 = vmatprep.subr.mxu0 %v913
  %957 = vmatpush1.msra.mxu0 %v912
  %958 = vmatprep.subr.mxu0 %v915
  %959 = vmatpush1.msra.mxu0 %v914
  %960 = vmatprep.subr.mxu0 %v917
  %961 = vmatpush1.msra.mxu0 %v916
  %962 = vmatprep.subr.mxu0 %v919
  %963 = vmatpush1.msra.mxu0 %v918
  %964 = vmatprep.subr.mxu0 %v921
  %965 = vmatpush1.msra.mxu0 %v920
  %966 = vmatprep.subr.mxu0 %v923
  %967 = vmatpush1.msra.mxu0 %v922
  %968 = vmatprep.subr.mxu0 %v925
  %969 = vmatpush1.msra.mxu0 %v924
  %970 = vmatprep.subr.mxu0 %v927
  %971 = vmatpush1.msra.mxu0 %v926
  %972 = vmatprep.subr.mxu0 %v929
  %973 = vmatpush1.msra.mxu0 %v928
  %974 = vmatprep.subr.mxu0 %v931
  %975 = vmatpush1.msra.mxu0 %v930
  %976 = vmatprep.subr.mxu0 %v933
  %977 = vmatpush1.msra.mxu0 %v932
  %978 = vmatprep.subr.mxu0 %v935
  %979 = vmatpush1.msra.mxu0 %v934
  %980 = vmatprep.subr.mxu0 %v937
  %981 = vmatpush1.msra.mxu0 %v936
  %982 = vmatprep.subr.mxu0 %v939
  %983 = vmatpush1.msra.mxu0 %v938
  %984 = vmatprep.subr.mxu0 %v941
  %985 = vmatpush1.msra.mxu0 %v940
  %986 = vmatprep.subr.mxu0 0.0
  %987 = vmatpush1.msra.mxu0 0.0
  %988 = vmatprep.subr.mxu0 0.0
  %989 = vmatpush1.msra.mxu0 0.0
  %990 = vmatprep.subr.mxu0 0.0
  %991 = vmatpush1.msra.mxu0 0.0
  %992 = vmatprep.subr.mxu0 0.0
  %993 = vmatpush1.msra.mxu0 0.0
  %994 = vmatprep.subr.mxu0 0.0
  %995 = vmatpush1.msra.mxu0 0.0
  %996 = vmatprep.subr.mxu0 0.0
  %997 = vmatpush1.msra.mxu0 0.0
  %998 = vmatprep.subr.mxu0 0.0
  %999 = vmatpush1.msra.mxu0 0.0
  %1000 = vmatprep.subr.mxu0 0.0
  %1001 = vmatpush1.msra.mxu0 0.0
  %1002 = vmatprep.subr.mxu0 0.0
  %1003 = vmatpush1.msra.mxu0 0.0
  %1004 = vmatprep.subr.mxu0 0.0
  %1005 = vmatpush1.msra.mxu0 0.0
  %1006 = vmatprep.subr.mxu0 0.0
  %1007 = vmatpush1.msra.mxu0 0.0
  %1008 = vmatprep.subr.mxu0 0.0
  %1009 = vmatpush1.msra.mxu0 0.0
  %1010 = vmatprep.subr.mxu0 0.0
  %1011 = vmatpush1.msra.mxu0 0.0
  %1012 = vmatprep.subr.mxu0 0.0
  %1013 = vmatpush1.msra.mxu0 0.0
  %1014 = vmatprep.subr.mxu0 0.0
  %1015 = vmatpush1.msra.mxu0 0.0
  %1016 = vmatprep.subr.mxu0 0.0
  %1017 = vmatpush1.msra.mxu0 0.0
  %1018 = vmatprep.mubr.f32.mxu0 0.0
  %1019 = vmatmul.mubr.f32.gmra.mrb[0].mxu0 %v909
  %v1020 = vpop.f32.mrb[0].mxu0
  %v1021 = vadd.f32 %v947, %v1020
  %v1022 = vpop.f32.mrb[0].mxu0
  %v1023 = vadd.f32 %v951, %v1022
  %1024 = vdwg.mxu0
  %v1025 = vxor.u32 %v1021, 2147483648
  %v1026 = vxor.u32 %v1023, 2147483648
  %v1027 = vmul.f32 %v1025, 1.442695
  %v1028 = vpow.pop %v1027
  %v1029 = vmul.f32 %v1026, 1.442695
  %v1030 = vpow.pop %v1029
  %v1031 = vadd.f32 %v1028, 1.0
  %v1032 = vadd.f32 %v1030, 1.0
  %v1033 = vrcp.pop %v1031
  %v1034 = vmul.f32 1.0, %v1033
  %v1035 = vrcp.pop %v1032
  %v1036 = vmul.f32 1.0, %v1035
  %1037 = vst [vmem:[%s9] sm:$0xff] %v1034
  %1038 = vst [vmem:[%s9 + $0x8] sm:$0xff] %v1036
  // Predicated region
  $region38: #{convolutional_ae_forward.1} parent=0 // pred_check
    _
  $region39: #{convolutional_ae_forward.1} parent=0 // pred_check_branch
    %1040 = sbr.rel (0) target = $region41
  $region40: #{convolutional_ae_forward.1} parent=0 // pred_region
    _
  $region41: #{convolutional_ae_forward.1} parent=0 // pred_fallthru
    _
  // Predicated region
  $region42: #{convolutional_ae_forward.1} parent=0 // pred_check
    _
  $region43: #{convolutional_ae_forward.1} parent=0 // pred_check_branch
    %1042 = sbr.rel (0) target = $region45
  $region44: #{convolutional_ae_forward.1} parent=0 // pred_region
    _
  $region45: #{convolutional_ae_forward.1} parent=0 // pred_fallthru
    _

</llo_original>
